<compile_context>
chip_gen: v6e
topology: v6e:2x2x1
jax: 0.10.0
libtpu: 0.0.40
codegen_flags: <defaults>
</compile_context>

<pallas_src>
import math

import jax
import jax.numpy as jnp
from jax.experimental import pallas as pl
from jax.experimental.pallas import tpu as pltpu

# ----------------------------- config (T5Config analog) ---------------------
D_MODEL = 32          # config.d_model
D_KV = 8              # config.d_kv
N_HEADS = 4           # config.num_heads
INNER = N_HEADS * D_KV
NUM_BUCKETS = 32      # config.relative_attention_num_buckets
MAX_DISTANCE = 128    # config.relative_attention_max_distance
IS_DECODER = False    # config.is_decoder
DROPOUT = 0.0         # dropout with p=0.0 is the identity -> elided

BATCH = 2
SEQ = 8


# ----------------------------- Pallas kernel --------------------------------
def t5_attention_kernel(x_ref, wqkv_ref, wo_ref, bias_ref, out_ref):
    # One grid step == one batch element.
    # x_ref:    (S, D_MODEL)         tokens of this batch element
    # wqkv_ref: (D_MODEL, 3*INNER)   lane-dense fused Q|K|V projection weight
    # wo_ref:   (INNER, D_MODEL)     lane-dense output projection weight
    # bias_ref: (H, S, S)            relative-position bias (+ optional mask)
    # out_ref:  (S, D_MODEL)
    s = x_ref.shape[0]
    x = x_ref[...]

    # Single dense QKV projection: (S, D) @ (D, 3*INNER) -> (S, 3*INNER).
    qkv = jnp.dot(x, wqkv_ref[...], preferred_element_type=jnp.float32)
    q = qkv[:, 0:INNER]                       # static lane slices
    k = qkv[:, INNER:2 * INNER]
    v = qkv[:, 2 * INNER:3 * INNER]

    # Head-major views for the per-head attention math.
    qh = jnp.transpose(q.reshape(s, N_HEADS, D_KV), (1, 0, 2))   # (H, S, d_kv)
    kh = jnp.transpose(k.reshape(s, N_HEADS, D_KV), (1, 0, 2))
    vh = jnp.transpose(v.reshape(s, N_HEADS, D_KV), (1, 0, 2))

    # NOTE: T5 does NOT scale scores by 1/sqrt(d_kv).
    scores = jnp.einsum('hqd,hkd->hqk', qh, kh,
                        preferred_element_type=jnp.float32)      # (H, S, S)
    scores = scores + bias_ref[...]

    # Numerically-stable softmax over keys (f32, exact divide).
    m = jnp.max(scores, axis=-1, keepdims=True)
    p = jnp.exp(scores - m)
    p = p / jnp.sum(p, axis=-1, keepdims=True)

    # Dropout with p=0.0 is the identity -> skipped.
    ctx = jnp.einsum('hqk,hkd->hqd', p, vh,
                     preferred_element_type=jnp.float32)         # (H, S, d_kv)

    # Fused output projection: re-pack heads lane-dense, one (S,32)@(32,32).
    ctx2 = jnp.transpose(ctx, (1, 0, 2)).reshape(s, INNER)       # (S, INNER)
    out_ref[...] = jnp.dot(ctx2, wo_ref[...],
                           preferred_element_type=jnp.float32
                           ).astype(out_ref.dtype)


def t5_attention_pallas(x, w_qkv, wo, bias):
    # x: (B, S, D) f32, w_qkv: (D, 3*INNER), wo: (INNER, D), bias: (Bb, H, S, S)
    B, S, D = x.shape
    Bb = bias.shape[0]  # 1 (shared bias) or B (batch-dependent mask)
    if Bb == B and B > 1:
        bias_idx = lambda b: (b, 0, 0, 0)
    else:
        bias_idx = lambda b: (0, 0, 0, 0)

    return pl.pallas_call(
        t5_attention_kernel,
        out_shape=jax.ShapeDtypeStruct((B, S, D), jnp.float32),
        grid_spec=pl.GridSpec(
            grid=(B,),
            in_specs=[
                pl.BlockSpec((None, S, D), lambda b: (b, 0, 0)),
                pl.BlockSpec(w_qkv.shape, lambda b: (0, 0)),
                pl.BlockSpec(wo.shape, lambda b: (0, 0)),
                pl.BlockSpec((None,) + bias.shape[1:], bias_idx),
            ],
            out_specs=pl.BlockSpec((None, S, D), lambda b: (b, 0, 0)),
        ),
        compiler_params=pltpu.CompilerParams(
            dimension_semantics=("parallel",)),
    )(x, w_qkv, wo, bias)


# --------------------- relative position bias (plain-JAX glue) --------------
def _relative_position_bucket(relative_position, bidirectional=True,
                              num_buckets=32, max_distance=128):
    relative_buckets = jnp.zeros_like(relative_position)
    if bidirectional:
        num_buckets //= 2
        relative_buckets = relative_buckets + (
            relative_position > 0).astype(jnp.int32) * num_buckets
        relative_position = jnp.abs(relative_position)
    else:
        relative_position = -jnp.minimum(relative_position,
                                         jnp.zeros_like(relative_position))
    max_exact = num_buckets // 2
    is_small = relative_position < max_exact
    # max(.,1) only affects the branch discarded by the where() below; it
    # avoids log(0) = -inf on the unused lane values.
    safe_pos = jnp.maximum(relative_position, 1).astype(jnp.float32)
    rel_if_large = max_exact + (
        jnp.log(safe_pos / max_exact)
        / math.log(max_distance / max_exact)
        * (num_buckets - max_exact)
    ).astype(jnp.int32)
    rel_if_large = jnp.minimum(rel_if_large, num_buckets - 1)
    relative_buckets = relative_buckets + jnp.where(
        is_small, relative_position, rel_if_large)
    return relative_buckets


def compute_bias(rel_attn_bias_weight, query_length, key_length):
    # rel_attn_bias_weight: [NUM_BUCKETS, N_HEADS] (nn.Embedding weight)
    context_position = jnp.arange(query_length, dtype=jnp.int32)[:, None]
    memory_position = jnp.arange(key_length, dtype=jnp.int32)[None, :]
    relative_position = memory_position - context_position
    buckets = _relative_position_bucket(
        relative_position,
        bidirectional=not IS_DECODER,
        num_buckets=NUM_BUCKETS,
        max_distance=MAX_DISTANCE,
    )
    values = rel_attn_bias_weight[buckets]            # [S, S, H]
    values = jnp.transpose(values, (2, 0, 1))[None]   # [1, H, S, S]
    return values


# --------------------------- module-level wrapper ----------------------------
def t5_attention_forward(hidden_states, params, mask=None, position_bias=None):
    """Returns (attn_output, position_bias), matching T5Attention.forward."""
    B, S, D = hidden_states.shape
    if position_bias is None:
        position_bias = compute_bias(params["rel_bias"], S, S)  # [1, H, S, S]
        if mask is not None:
            position_bias = position_bias + mask

    # Lane-dense fused QKV weight (D, 3*INNER); output weight already (INNER, D).
    w_qkv = jnp.concatenate(
        [params["wq"], params["wk"], params["wv"]], axis=1).astype(jnp.float32)
    wo = params["wo"].astype(jnp.float32)

    # Kernel bias: (Bb, H, S, S) with Bb in {1, B} (no block-diagonal packing).
    pb = jnp.asarray(position_bias, jnp.float32)
    bias = jnp.broadcast_to(pb, (pb.shape[0], N_HEADS, S, S))

    out = t5_attention_pallas(hidden_states.astype(jnp.float32), w_qkv, wo, bias)
    attn_out = out.astype(hidden_states.dtype)
    return attn_out, position_bias


# ----------------------------- pure-JAX reference ----------------------------
def t5_attention_reference(hidden_states, params, position_bias):
    B, S, _ = hidden_states.shape
    q = hidden_states @ params["wq"]
    k = hidden_states @ params["wk"]
    v = hidden_states @ params["wv"]

    def shape(x):
        return jnp.transpose(x.reshape(B, S, N_HEADS, D_KV), (0, 2, 1, 3))

    qh, kh, vh = shape(q), shape(k), shape(v)
    scores = jnp.einsum("bhqd,bhkd->bhqk", qh, kh) + position_bias
    attn = jax.nn.softmax(scores.astype(jnp.float32), axis=-1)
    ctx = jnp.einsum("bhqk,bhkd->bhqd", attn, vh)
    ctx = jnp.transpose(ctx, (0, 2, 1, 3)).reshape(B, S, INNER)
    return ctx @ params["wo"]


# ----------------------------------- main ------------------------------------
if __name__ == "__main__":
    key = jax.random.PRNGKey(0)
    k_x, k_q, k_k, k_v, k_o, k_b = jax.random.split(key, 6)

    hidden_states = jax.random.normal(k_x, (BATCH, SEQ, D_MODEL), jnp.float32)

    params = {
        # weights stored [in, out] (PyTorch Linear weight transposed)
        "wq": jax.random.normal(k_q, (D_MODEL, INNER), jnp.float32) * 0.05,
        "wk": jax.random.normal(k_k, (D_MODEL, INNER), jnp.float32) * 0.05,
        "wv": jax.random.normal(k_v, (D_MODEL, INNER), jnp.float32) * 0.05,
        "wo": jax.random.normal(k_o, (INNER, D_MODEL), jnp.float32) * 0.05,
        # nn.Embedding(num_buckets, n_heads).weight
        "rel_bias": jax.random.normal(k_b, (NUM_BUCKETS, N_HEADS), jnp.float32) * 0.1,
    }

    attn_out, pos_bias = t5_attention_forward(hidden_states, params, mask=None)
    attn_out = jax.block_until_ready(attn_out)

    ref = t5_attention_reference(hidden_states, params, pos_bias)
    assert attn_out.shape == (BATCH, SEQ, D_MODEL)
    assert pos_bias.shape == (1, N_HEADS, SEQ, SEQ)
    # tolerance covers TPU default (bf16-pass) f32 matmul precision differences
    # between the Pallas kernel and the XLA reference; softmax is exact.
    assert jnp.allclose(attn_out, ref, atol=2e-3, rtol=2e-3), "mismatch vs reference"

    print("KERNEL_OK")
</pallas_src>

<mosaic_0001>
module attributes {stable_mosaic.version = 11 : i64} {
  func.func @t5_attention_kernel(%arg0: i32, %arg1: memref<1x8x32xf32, #tpu.memory_space<vmem>>, %arg2: memref<32x96xf32, #tpu.memory_space<vmem>>, %arg3: memref<32x32xf32, #tpu.memory_space<vmem>>, %arg4: memref<1x4x8x8xf32, #tpu.memory_space<vmem>>, %arg5: memref<1x8x32xf32, #tpu.memory_space<vmem>>) attributes {dimension_semantics = [#tpu.dimension_semantics<parallel>], iteration_bounds = array<i64: 2>, scalar_prefetch = 0 : i64, scratch_operands = 0 : i64, tpu.core_type = #tpu.core_type<tc>, window_params = [{transform_indices = @transform_0, window_bounds = array<i64: 1, 8, 32>}, {pipeline_mode = #tpu.pipeline_mode<synchronous>, transform_indices = @transform_1, window_bounds = array<i64: 32, 96>}, {pipeline_mode = #tpu.pipeline_mode<synchronous>, transform_indices = @transform_2, window_bounds = array<i64: 32, 32>}, {pipeline_mode = #tpu.pipeline_mode<synchronous>, transform_indices = @transform_3, window_bounds = array<i64: 1, 4, 8, 8>}, {transform_indices = @transform_4, window_bounds = array<i64: 1, 8, 32>}]} {
    %c0 = arith.constant 0 : index
    %c0_0 = arith.constant 0 : index
    %c0_1 = arith.constant 0 : index
    %0 = vector.load %arg1[%c0, %c0_0, %c0_1] : memref<1x8x32xf32, #tpu.memory_space<vmem>>, vector<1x8x32xf32>
    %1 = vector.shape_cast %0 : vector<1x8x32xf32> to vector<8x32xf32>
    %c0_2 = arith.constant 0 : index
    %c0_3 = arith.constant 0 : index
    %2 = vector.load %arg2[%c0_2, %c0_3] : memref<32x96xf32, #tpu.memory_space<vmem>>, vector<32x96xf32>
    %cst = arith.constant dense<0.000000e+00> : vector<8x96xf32>
    %3 = tpu.matmul %1, %2, %cst {dimension_numbers = #tpu.dot_dimension_numbers<[1], [0], [0], [1], [0, 0, 1, 1], [], []>} : vector<8x32xf32>, vector<32x96xf32>, vector<8x96xf32> -> vector<8x96xf32>
    %4 = vector.extract_strided_slice %3 {offsets = [0, 0], sizes = [8, 32], strides = [1, 1]} : vector<8x96xf32> to vector<8x32xf32>
    %5 = vector.extract_strided_slice %3 {offsets = [0, 32], sizes = [8, 32], strides = [1, 1]} : vector<8x96xf32> to vector<8x32xf32>
    %6 = vector.extract_strided_slice %3 {offsets = [0, 64], sizes = [8, 32], strides = [1, 1]} : vector<8x96xf32> to vector<8x32xf32>
    %7 = vector.shape_cast %4 : vector<8x32xf32> to vector<8x4x8xf32>
    %8 = tpu.transpose %7, [1, 0, 2] : vector<8x4x8xf32> -> vector<4x8x8xf32>
    %9 = vector.shape_cast %5 : vector<8x32xf32> to vector<8x4x8xf32>
    %10 = tpu.transpose %9, [1, 0, 2] : vector<8x4x8xf32> -> vector<4x8x8xf32>
    %11 = vector.shape_cast %6 : vector<8x32xf32> to vector<8x4x8xf32>
    %12 = tpu.transpose %11, [1, 0, 2] : vector<8x4x8xf32> -> vector<4x8x8xf32>
    "tpu.trace_start"() <{level = 10 : i32, message = "hqd,hkd->hqk"}> : () -> ()
    %cst_4 = arith.constant dense<0.000000e+00> : vector<4x8x8xf32>
    %13 = tpu.matmul %8, %10, %cst_4 {dimension_numbers = #tpu.dot_dimension_numbers<[2], [2], [1], [1], [0, 0, 0, 1, 1, 1], [0], [0]>} : vector<4x8x8xf32>, vector<4x8x8xf32>, vector<4x8x8xf32> -> vector<4x8x8xf32>
    "tpu.trace_stop"() : () -> ()
    %c0_5 = arith.constant 0 : index
    %c0_6 = arith.constant 0 : index
    %c0_7 = arith.constant 0 : index
    %c0_8 = arith.constant 0 : index
    %14 = vector.load %arg4[%c0_5, %c0_6, %c0_7, %c0_8] : memref<1x4x8x8xf32, #tpu.memory_space<vmem>>, vector<1x4x8x8xf32>
    %15 = vector.shape_cast %14 : vector<1x4x8x8xf32> to vector<4x8x8xf32>
    %16 = arith.addf %13, %15 : vector<4x8x8xf32>
    %cst_9 = arith.constant dense<0xFF800000> : vector<4x8xf32>
    %17 = vector.multi_reduction <maximumf>, %16, %cst_9 [2] : vector<4x8x8xf32> to vector<4x8xf32>
    %18 = vector.shape_cast %17 : vector<4x8xf32> to vector<4x8x1xf32>
    %19 = vector.broadcast %18 : vector<4x8x1xf32> to vector<4x8x8xf32>
    %20 = arith.subf %16, %19 : vector<4x8x8xf32>
    %21 = math.exp %20 : vector<4x8x8xf32>
    %cst_10 = arith.constant dense<0.000000e+00> : vector<4x8xf32>
    %22 = vector.multi_reduction <add>, %21, %cst_10 [2] : vector<4x8x8xf32> to vector<4x8xf32>
    %23 = vector.shape_cast %22 : vector<4x8xf32> to vector<4x8x1xf32>
    %24 = vector.broadcast %23 : vector<4x8x1xf32> to vector<4x8x8xf32>
    %25 = arith.divf %21, %24 : vector<4x8x8xf32>
    "tpu.trace_start"() <{level = 10 : i32, message = "hqk,hkd->hqd"}> : () -> ()
    %cst_11 = arith.constant dense<0.000000e+00> : vector<4x8x8xf32>
    %26 = tpu.matmul %25, %12, %cst_11 {dimension_numbers = #tpu.dot_dimension_numbers<[2], [1], [1], [2], [0, 0, 0, 1, 1, 2], [0], [0]>} : vector<4x8x8xf32>, vector<4x8x8xf32>, vector<4x8x8xf32> -> vector<4x8x8xf32>
    "tpu.trace_stop"() : () -> ()
    %27 = tpu.transpose %26, [1, 0, 2] : vector<4x8x8xf32> -> vector<8x4x8xf32>
    %28 = vector.shape_cast %27 : vector<8x4x8xf32> to vector<8x32xf32>
    %c0_12 = arith.constant 0 : index
    %c0_13 = arith.constant 0 : index
    %29 = vector.load %arg3[%c0_12, %c0_13] : memref<32x32xf32, #tpu.memory_space<vmem>>, vector<32x32xf32>
    %cst_14 = arith.constant dense<0.000000e+00> : vector<8x32xf32>
    %30 = tpu.matmul %28, %29, %cst_14 {dimension_numbers = #tpu.dot_dimension_numbers<[1], [0], [0], [1], [0, 0, 1, 1], [], []>} : vector<8x32xf32>, vector<32x32xf32>, vector<8x32xf32> -> vector<8x32xf32>
    %c0_15 = arith.constant 0 : index
    %c0_16 = arith.constant 0 : index
    %c0_17 = arith.constant 0 : index
    %31 = vector.load %arg5[%c0_15, %c0_16, %c0_17] : memref<1x8x32xf32, #tpu.memory_space<vmem>>, vector<1x8x32xf32>
    %32 = vector.shape_cast %31 : vector<1x8x32xf32> to vector<8x32xf32>
    %33 = vector.shape_cast %30 : vector<8x32xf32> to vector<1x8x32xf32>
    tpu.vector_store %arg5[%c0_15, %c0_16, %c0_17], %33 {strides = array<i32>} : memref<1x8x32xf32, #tpu.memory_space<vmem>>, vector<1x8x32xf32>,
    return
  }
  func.func @transform_0(%arg0: i32) -> (i32, i32, i32) {
    %c0_i32 = arith.constant 0 : i32
    %c0_i32_0 = arith.constant 0 : i32
    %c0_i32_1 = arith.constant 0 : i32
    return %arg0, %c0_i32, %c0_i32_0 : i32, i32, i32
  }
  func.func @transform_1(%arg0: i32) -> (i32, i32) {
    %c0_i32 = arith.constant 0 : i32
    %c0_i32_0 = arith.constant 0 : i32
    %c0_i32_1 = arith.constant 0 : i32
    return %c0_i32, %c0_i32_0 : i32, i32
  }
  func.func @transform_2(%arg0: i32) -> (i32, i32) {
    %c0_i32 = arith.constant 0 : i32
    %c0_i32_0 = arith.constant 0 : i32
    %c0_i32_1 = arith.constant 0 : i32
    return %c0_i32, %c0_i32_0 : i32, i32
  }
  func.func @transform_3(%arg0: i32) -> (i32, i32, i32, i32) {
    %c0_i32 = arith.constant 0 : i32
    %c0_i32_0 = arith.constant 0 : i32
    %c0_i32_1 = arith.constant 0 : i32
    %c0_i32_2 = arith.constant 0 : i32
    %c0_i32_3 = arith.constant 0 : i32
    return %c0_i32, %c0_i32_0, %c0_i32_1, %c0_i32_2 : i32, i32, i32, i32
  }
  func.func @transform_4(%arg0: i32) -> (i32, i32, i32) {
    %c0_i32 = arith.constant 0 : i32
    %c0_i32_0 = arith.constant 0 : i32
    %c0_i32_1 = arith.constant 0 : i32
    return %arg0, %c0_i32, %c0_i32_0 : i32, i32, i32
  }
}

</mosaic_0001>

<llo_original>
// kernel: tpu_custom_call.1
$region0: #{tpu_custom_call.1}
  #allocation0 [shape = 'u32[]', space=smem, size = 0x4, offset = 0x4, fixed_abs, tag = 'smem constant byte address 0x4 - core index']
  #allocation1 [shape = 'u32[144,128]{1,0:T(1,128)}', space=vmem, size = 0x12000, scoped, tag = 'internal scratch']
  %s0 = inlined_call_operand.hbm [shape: f32[2,8,32], index: 0, kind: input, shape index: {}]
  %s1 = inlined_call_operand.hbm [shape: f32[32,96], index: 1, kind: input, shape index: {}]
  %s2 = inlined_call_operand.hbm [shape: f32[32,32], index: 2, kind: input, shape index: {}]
  %s3 = inlined_call_operand.hbm [shape: f32[1,4,8,8], index: 3, kind: input, shape index: {}]
  %s4 = inlined_call_operand.hbm [shape: f32[2,8,32], index: 4, kind: output, shape index: {}]
  %s5 = sld [smem:[#allocation0]]
  $region65: #{tpu_custom_call.1} parent=0
    _
  %s7 = ssub.s32 1, %s5
  %s8 = scalar_select 0, %s7, %s5
  $region1: #{tpu_custom_call.1} parent=0
    #allocation2 [shape = 'u8[8192]{0}', space=vmem, size = 0x2000, scoped, tag = 'input window, operand 0']
    #allocation3 [shape = 's32[2]{0}', space=sflag, size = 0x8, scoped, tag = 'scoped memory for tpu_custom_call.1']
    #allocation4 [shape = 's32[2]{0}', space=sflag, size = 0x8, scoped, tag = 'scoped memory for tpu_custom_call.1']
    #allocation5 [shape = 'u8[16384]{0}', space=vmem, size = 0x4000, scoped, tag = 'input window, operand 1, single buffered']
    #allocation6 [shape = 's32[1]{0}', space=sflag, size = 0x4, scoped, tag = 'scoped memory for tpu_custom_call.1']
    #allocation7 [shape = 'u8[16384]{0}', space=vmem, size = 0x4000, scoped, tag = 'input window, operand 2, single buffered']
    #allocation8 [shape = 'u8[16384]{0}', space=vmem, size = 0x4000, scoped, tag = 'input window, operand 3, single buffered']
    #allocation9 [shape = 's32[1]{0}', space=sflag, size = 0x4, scoped, tag = 'scoped memory for tpu_custom_call.1']
    #allocation10 [shape = 'u8[8192]{0}', space=vmem, size = 0x2000, scoped, tag = 'output window, operand 0']
    %9 = vsyncpa [#allocation3], 0
    %s10 = scalar_lea.sflag [#allocation3], 1
    %11 = vsyncpa %s10, 0
    %12 = vsyncpa [#allocation6], 0
    %13 = vsyncpa [#allocation9], 0
    %14 = vsyncpa [#allocation4], 0
    %s15 = scalar_lea.sflag [#allocation4], 1
    %16 = vsyncpa %s15, 0
    loop: start=0, step=1, limit=4
    $region2: #{tpu_custom_call.1} parent=1 // loop_pre_header
      _
    $region3: #{tpu_custom_call.1} parent=1 // loop_header
      %s18 = sphi 0, %s22
      %p19 = scmp.ge.s32.totalorder %s18, 4
      %s28 = sphi 0, %s30
      %s31 = sphi 0, %s28
      %s32 = sphi 0, %s31
      %s48 = sphi 0, %s32
      %s52 = sphi 0, %s52
      %s54 = sphi 0, %s52
      %s55 = sphi 0, %s54
      %s69 = sphi 0, %s55
      %s73 = sphi 0, %s73
      %s75 = sphi 0, %s73
      %s76 = sphi 0, %s75
      %s90 = sphi 0, %s76
      %s94 = sphi 0, %s94
      %s96 = sphi 0, %s94
      %s97 = sphi 0, %s96
      %s111 = sphi 0, %s97
      %s117 = sphi 0, %s119
      %s120 = sphi 0, %s117
      %s121 = sphi 0, %s120
      %s137 = sphi 0, %s121
    $region4: #{tpu_custom_call.1} parent=1 // loop_header_branch
      %21 = sbr.rel (%p19) target = $region8
    $region5: #{tpu_custom_call.1} parent=1 // loop_body
      %s23 = ssub.s32 %s18, 1
      %s24 = ssub.s32 %s18, 2
      %s25 = sadd.s32 %s18, 1
      %s26 = ssub.s32 %s18, %s25
      %p27 = scmp.eq.s32.totalorder %s26, 0
      %s29 = sadd.s32 %s28, 1
      %s30 = scalar_select %p27, %s28, %s29
      %p33 = pneg %p27
      %p34 = scmp.eq.s32.totalorder %s18, 1
      %p35 = por %p33, %p34
      %p36 = scmp.ne.s32.totalorder %s28, %s31
      %p37 = scmp.eq.s32.totalorder %s18, 0
      %p38 = por %p36, %p37
      %p39 = scmp.ne.s32.totalorder %s28, %s31
      %p40 = scmp.eq.s32.totalorder %s23, 1
      %p41 = por %p39, %p40
      %p42 = scmp.ne.s32.totalorder %s31, %s32
      %p43 = scmp.eq.s32.totalorder %s23, 0
      %p44 = por %p42, %p43
      %p45 = scmp.ne.s32.totalorder %s31, %s32
      %p46 = scmp.eq.s32.totalorder %s24, 1
      %p47 = por %p45, %p46
      %p49 = scmp.ne.s32.totalorder %s32, %s48
      %p50 = scmp.eq.s32.totalorder %s24, 0
      %p51 = por %p49, %p50
      %s53 = sadd.s32 %s52, 1
      %p56 = scmp.eq.s32.totalorder %s18, 1
      %p57 = scmp.ne.s32.totalorder %s52, %s54
      %p58 = scmp.eq.s32.totalorder %s18, 0
      %p59 = por %p57, %p58
      %p60 = scmp.ne.s32.totalorder %s52, %s54
      %p61 = scmp.eq.s32.totalorder %s23, 1
      %p62 = por %p60, %p61
      %p63 = scmp.ne.s32.totalorder %s54, %s55
      %p64 = scmp.eq.s32.totalorder %s23, 0
      %p65 = por %p63, %p64
      %p66 = scmp.ne.s32.totalorder %s54, %s55
      %p67 = scmp.eq.s32.totalorder %s24, 1
      %p68 = por %p66, %p67
      %p70 = scmp.ne.s32.totalorder %s55, %s69
      %p71 = scmp.eq.s32.totalorder %s24, 0
      %p72 = por %p70, %p71
      %s74 = sadd.s32 %s73, 1
      %p77 = scmp.eq.s32.totalorder %s18, 1
      %p78 = scmp.ne.s32.totalorder %s73, %s75
      %p79 = scmp.eq.s32.totalorder %s18, 0
      %p80 = por %p78, %p79
      %p81 = scmp.ne.s32.totalorder %s73, %s75
      %p82 = scmp.eq.s32.totalorder %s23, 1
      %p83 = por %p81, %p82
      %p84 = scmp.ne.s32.totalorder %s75, %s76
      %p85 = scmp.eq.s32.totalorder %s23, 0
      %p86 = por %p84, %p85
      %p87 = scmp.ne.s32.totalorder %s75, %s76
      %p88 = scmp.eq.s32.totalorder %s24, 1
      %p89 = por %p87, %p88
      %p91 = scmp.ne.s32.totalorder %s76, %s90
      %p92 = scmp.eq.s32.totalorder %s24, 0
      %p93 = por %p91, %p92
      %s95 = sadd.s32 %s94, 1
      %p98 = scmp.eq.s32.totalorder %s18, 1
      %p99 = scmp.ne.s32.totalorder %s94, %s96
      %p100 = scmp.eq.s32.totalorder %s18, 0
      %p101 = por %p99, %p100
      %p102 = scmp.ne.s32.totalorder %s94, %s96
      %p103 = scmp.eq.s32.totalorder %s23, 1
      %p104 = por %p102, %p103
      %p105 = scmp.ne.s32.totalorder %s96, %s97
      %p106 = scmp.eq.s32.totalorder %s23, 0
      %p107 = por %p105, %p106
      %p108 = scmp.ne.s32.totalorder %s96, %s97
      %p109 = scmp.eq.s32.totalorder %s24, 1
      %p110 = por %p108, %p109
      %p112 = scmp.ne.s32.totalorder %s97, %s111
      %p113 = scmp.eq.s32.totalorder %s24, 0
      %p114 = por %p112, %p113
      %s115 = ssub.s32 %s18, %s25
      %p116 = scmp.eq.s32.totalorder %s115, 0
      %s118 = sadd.s32 %s117, 1
      %s119 = scalar_select %p116, %s117, %s118
      %p122 = pneg %p116
      %p123 = scmp.eq.s32.totalorder %s18, 1
      %p124 = por %p122, %p123
      %p125 = scmp.ne.s32.totalorder %s117, %s120
      %p126 = scmp.eq.s32.totalorder %s18, 0
      %p127 = por %p125, %p126
      %p128 = scmp.ne.s32.totalorder %s117, %s120
      %p129 = scmp.eq.s32.totalorder %s23, 1
      %p130 = por %p128, %p129
      %p131 = scmp.ne.s32.totalorder %s120, %s121
      %p132 = scmp.eq.s32.totalorder %s23, 0
      %p133 = por %p131, %p132
      %p134 = scmp.ne.s32.totalorder %s120, %s121
      %p135 = scmp.eq.s32.totalorder %s24, 1
      %p136 = por %p134, %p135
      %p138 = scmp.ne.s32.totalorder %s121, %s137
      %p139 = scmp.eq.s32.totalorder %s24, 0
      %p140 = por %p138, %p139
      %p141 = scmp.le.s32.totalorder 1, %s18
      %p142 = scmp.lt.s32.totalorder %s18, 3
      %p143 = pnand %p141, %p142
      %p144 = pneg %p143
      // Predicated region
      $region9: #{tpu_custom_call.1} parent=5 // pred_check
        _
      $region10: #{tpu_custom_call.1} parent=5 // pred_check_branch
        %146 = sbr.rel (%p143) target = $region12
      $region11: #{tpu_custom_call.1} parent=5 // pred_region
        %s147 = ssub.s32 %s18, 1
        // Predicated region
        $region13: #{tpu_custom_call.1} parent=11 // pred_check
          %p148 = pneg %p65
        $region14: #{tpu_custom_call.1} parent=11 // pred_check_branch
          %150 = sbr.rel (%p148) target = $region16
        $region15: #{tpu_custom_call.1} parent=11 // pred_region
          %s152 = ssub.s32 512, 512
          %153 = vsyncadd [#allocation6], %s152
          %s154 = sshll.u32 [#allocation5], 4
          %s155 = int_to_ptr.vmem [resolvable:$true] %s154
          %160 = dma.hbm_to_vmem [thread:$0]  %s1, 512, %s155, [#allocation6], 128, 128, 8
        $region16: #{tpu_custom_call.1} parent=11 // pred_fallthru
          _
        // Predicated region
        $region17: #{tpu_custom_call.1} parent=11 // pred_check
          %p161 = pneg %p86
        $region18: #{tpu_custom_call.1} parent=11 // pred_check_branch
          %163 = sbr.rel (%p161) target = $region20
        $region19: #{tpu_custom_call.1} parent=11 // pred_region
          %s165 = ssub.s32 512, 512
          %166 = vsyncadd [#allocation6], %s165
          %s167 = sshll.u32 [#allocation7], 4
          %s168 = int_to_ptr.vmem [resolvable:$true] %s167
          %173 = dma.hbm_to_vmem [thread:$0]  %s2, 512, %s168, [#allocation6], 128, 128, 8
        $region20: #{tpu_custom_call.1} parent=11 // pred_fallthru
          _
        // Predicated region
        $region21: #{tpu_custom_call.1} parent=11 // pred_check
          %p174 = pneg %p107
        $region22: #{tpu_custom_call.1} parent=11 // pred_check_branch
          %176 = sbr.rel (%p174) target = $region24
        $region23: #{tpu_custom_call.1} parent=11 // pred_region
          %s178 = ssub.s32 512, 512
          %179 = vsyncadd [#allocation9], %s178
          %s180 = sshll.u32 [#allocation8], 4
          %s181 = int_to_ptr.vmem [resolvable:$true] %s180
          %186 = dma.hbm_to_vmem [thread:$0]  %s3, 512, %s181, [#allocation9], 128, 128, 8
        $region24: #{tpu_custom_call.1} parent=11 // pred_fallthru
          _
      $region12: #{tpu_custom_call.1} parent=5 // pred_fallthru
        _
      %p187 = scmp.lt.s32.totalorder %s18, 2
      // Predicated region
      $region25: #{tpu_custom_call.1} parent=5 // pred_check
        %p188 = pneg %p187
      $region26: #{tpu_custom_call.1} parent=5 // pred_check_branch
        %190 = sbr.rel (%p188) target = $region28
      $region27: #{tpu_custom_call.1} parent=5 // pred_region
        // Predicated region
        $region29: #{tpu_custom_call.1} parent=27 // pred_check
          %p191 = pneg %p38
        $region30: #{tpu_custom_call.1} parent=27 // pred_check_branch
          %193 = sbr.rel (%p191) target = $region32
        $region31: #{tpu_custom_call.1} parent=27 // pred_region
          %s194 = sand.u32 %s28, 1
          %s195 = scalar_lea.sflag [#allocation3], %s194
          %s196 = sand.u32 %s28, 1
          %s197 = smul.addr %s196, 8
          %s198 = scalar_lea.vmem [#allocation2], %s197
          %s200 = ssub.s32 128, 128
          %201 = vsyncadd %s195, %s200
          %s202 = smul.addr %s18, 128
          %s203 = scalar_lea.hbm %s0, %s202
          %s205 = sshll.u32 %s198, 4
          %s206 = int_to_ptr.vmem [resolvable:$true] %s205
          %208 = dma.hbm_to_vmem [thread:$0]  %s203, 128, %s206, %s195
        $region32: #{tpu_custom_call.1} parent=27 // pred_fallthru
          _
      $region28: #{tpu_custom_call.1} parent=5 // pred_fallthru
        _
      %p209 = scmp.le.s32.totalorder 1, %s18
      %p210 = scmp.lt.s32.totalorder %s18, 3
      %p211 = pnand %p209, %p210
      %p212 = pneg %p211
      // Predicated region
      $region33: #{tpu_custom_call.1} parent=5 // pred_check
        _
      $region34: #{tpu_custom_call.1} parent=5 // pred_check_branch
        %214 = sbr.rel (%p211) target = $region36
      $region35: #{tpu_custom_call.1} parent=5 // pred_region
        %s215 = ssub.s32 %s18, 1
        %s216 = sand.u32 %s31, 1
        %s217 = scalar_lea.sflag [#allocation3], %s216
        %s218 = sand.u32 %s31, 1
        %s219 = smul.addr %s218, 8
        %s220 = scalar_lea.vmem [#allocation2], %s219
        // Predicated region
        $region37: #{tpu_custom_call.1} parent=35 // pred_check
          %p221 = pneg %p44
        $region38: #{tpu_custom_call.1} parent=35 // pred_check_branch
          %223 = sbr.rel (%p221) target = $region40
        $region39: #{tpu_custom_call.1} parent=35 // pred_region
          %224 = dma.done %s217, 128
        $region40: #{tpu_custom_call.1} parent=35 // pred_fallthru
          _
        // Predicated region
        $region41: #{tpu_custom_call.1} parent=35 // pred_check
          %p225 = pneg %p65
        $region42: #{tpu_custom_call.1} parent=35 // pred_check_branch
          %227 = sbr.rel (%p225) target = $region44
        $region43: #{tpu_custom_call.1} parent=35 // pred_region
          %228 = dma.done [#allocation6], 512
        $region44: #{tpu_custom_call.1} parent=35 // pred_fallthru
          _
        // Predicated region
        $region45: #{tpu_custom_call.1} parent=35 // pred_check
          %p229 = pneg %p86
        $region46: #{tpu_custom_call.1} parent=35 // pred_check_branch
          %231 = sbr.rel (%p229) target = $region48
        $region47: #{tpu_custom_call.1} parent=35 // pred_region
          %232 = dma.done [#allocation6], 512
        $region48: #{tpu_custom_call.1} parent=35 // pred_fallthru
          _
        // Predicated region
        $region49: #{tpu_custom_call.1} parent=35 // pred_check
          %p233 = pneg %p107
        $region50: #{tpu_custom_call.1} parent=35 // pred_check_branch
          %235 = sbr.rel (%p233) target = $region52
        $region51: #{tpu_custom_call.1} parent=35 // pred_region
          %236 = dma.done [#allocation9], 512
        $region52: #{tpu_custom_call.1} parent=35 // pred_fallthru
          _
        %s237 = sand.u32 %s31, 1
        %s238 = scalar_lea.sflag [#allocation3], %s237
        %s239 = sand.u32 %s31, 1
        %s240 = smul.addr %s239, 8
        %s241 = scalar_lea.vmem [#allocation2], %s240
        %p242 = pneg %p44
        %p243 = pneg %p41
        %p244 = pneg %p65
        %p245 = pneg %p62
        %p246 = pneg %p86
        %p247 = pneg %p83
        %p248 = pneg %p107
        %p249 = pneg %p104
        %p250 = pneg %p133
        %p251 = pneg %p130
        %s252 = sand.u32 %s120, 1
        %s253 = scalar_lea.sflag [#allocation4], %s252
        %s254 = sand.u32 %s120, 1
        %s255 = smul.addr %s254, 8
        %s256 = scalar_lea.vmem [#allocation10], %s255
        %v257 = vld [vmem:[%s220] sm:$0xff]
        %v258 = vld [vmem:[#allocation5] sm:$0xff]
        %v259 = vld [vmem:[#allocation5 + $0x8] sm:$0xff]
        %v260 = vld [vmem:[#allocation5 + $0x10] sm:$0xff]
        %v261 = vld [vmem:[#allocation5 + $0x18] sm:$0xff]
        %vm262 = vcmask 261120
        %v264 = vsel %vm262, %v257, 0
        %266 = vmatprep.subr.mxu0 0.0
        %267 = vmatpush1.msra.mxu0 0.0
        %268 = vmatprep.subr.mxu0 0.0
        %269 = vmatpush1.msra.mxu0 0.0
        %270 = vmatprep.subr.mxu0 0.0
        %271 = vmatpush1.msra.mxu0 0.0
        %272 = vmatprep.subr.mxu0 0.0
        %273 = vmatpush1.msra.mxu0 0.0
        %274 = vmatprep.subr.mxu0 0.0
        %275 = vmatpush1.msra.mxu0 0.0
        %276 = vmatprep.subr.mxu0 0.0
        %277 = vmatpush1.msra.mxu0 0.0
        %278 = vmatprep.subr.mxu0 0.0
        %279 = vmatpush1.msra.mxu0 0.0
        %280 = vmatprep.subr.mxu0 0.0
        %281 = vmatpush1.msra.mxu0 0.0
        %282 = vmatprep.subr.mxu0 0.0
        %283 = vmatpush1.msra.mxu0 0.0
        %284 = vmatprep.subr.mxu0 0.0
        %285 = vmatpush1.msra.mxu0 0.0
        %286 = vmatprep.subr.mxu0 0.0
        %287 = vmatpush1.msra.mxu0 0.0
        %288 = vmatprep.subr.mxu0 0.0
        %289 = vmatpush1.msra.mxu0 0.0
        %290 = vmatprep.subr.mxu0 0.0
        %291 = vmatpush1.msra.mxu0 %v261
        %292 = vmatprep.subr.mxu0 0.0
        %293 = vmatpush1.msra.mxu0 %v260
        %294 = vmatprep.subr.mxu0 0.0
        %295 = vmatpush1.msra.mxu0 %v259
        %296 = vmatprep.subr.mxu0 0.0
        %297 = vmatpush1.msra.mxu0 %v258
        %298 = vmatprep.subr.mxu0 0.0
        %299 = vmatpush2.msra.mxu0 0.0
        %300 = vmatprep.subr.mxu0 0.0
        %301 = vmatpush2.msra.mxu0 0.0
        %302 = vmatprep.subr.mxu0 0.0
        %303 = vmatpush2.msra.mxu0 0.0
        %304 = vmatprep.subr.mxu0 0.0
        %305 = vmatpush2.msra.mxu0 0.0
        %306 = vmatprep.subr.mxu0 0.0
        %307 = vmatpush2.msra.mxu0 0.0
        %308 = vmatprep.subr.mxu0 0.0
        %309 = vmatpush2.msra.mxu0 0.0
        %310 = vmatprep.subr.mxu0 0.0
        %311 = vmatpush2.msra.mxu0 0.0
        %312 = vmatprep.subr.mxu0 0.0
        %313 = vmatpush2.msra.mxu0 0.0
        %314 = vmatprep.subr.mxu0 0.0
        %315 = vmatpush2.msra.mxu0 0.0
        %316 = vmatprep.subr.mxu0 0.0
        %317 = vmatpush2.msra.mxu0 0.0
        %318 = vmatprep.subr.mxu0 0.0
        %319 = vmatpush2.msra.mxu0 0.0
        %320 = vmatprep.subr.mxu0 0.0
        %321 = vmatpush2.msra.mxu0 0.0
        %322 = vmatprep.subr.mxu0 0.0
        %323 = vmatpush2.msra.mxu0 0.0
        %324 = vmatprep.subr.mxu0 0.0
        %325 = vmatpush2.msra.mxu0 0.0
        %326 = vmatprep.subr.mxu0 0.0
        %327 = vmatpush2.msra.mxu0 0.0
        %328 = vmatprep.subr.mxu0 0.0
        %329 = vmatpush2.msra.mxu0 0.0
        %330 = vmatprep.mubr.f32.mxu0 0.0
        %331 = vmatmul.mubr.f32.gmra.mxu0 %v264
        %v332 = vpop.f32.mrf.mxu0
        %v333 = vadd.f32 0.0, %v332
        %v334 = vpop.f32.mrf.mxu0
        %335 = vdwg.mxu0
        %337 = vrot.lane.b32.xlu0 %v333, 120
        %v338 = vpop.permute.xlu0 %337
        %340 = vrot.lane.b32.xlu0 %v333, 112
        %v341 = vpop.permute.xlu0 %340
        %343 = vrot.lane.b32.xlu0 %v333, 104
        %v344 = vpop.permute.xlu0 %343
        %v346 = vcombine.low %v333, %v341
        %v347 = vcombine.high %v333, %v341
        %v349 = vunpack.c.l.s4 1983009808
        %v350 = vunpack.c.0.s8 %v349
        %v351 = vlaneseq
        %v352 = vshrl.u32 %v351, 7
        %v353 = vsub.s32 %v350, %v352
        %v354 = vrot.slane %v346, %v353
        %v356 = vunpack.c.l.s4 1983009808
        %v357 = vunpack.c.0.s8 %v356
        %v358 = vlaneseq
        %v359 = vshrl.u32 %v358, 7
        %v360 = vsub.s32 %v357, %v359
        %v361 = vrot.slane %v347, %v360
        %v362 = vcombine.low %v338, %v344
        %v363 = vcombine.high %v338, %v344
        %v365 = vunpack.c.l.s4 1983009808
        %v366 = vunpack.c.0.s8 %v365
        %v367 = vlaneseq
        %v368 = vshrl.u32 %v367, 7
        %v369 = vsub.s32 %v366, %v368
        %v370 = vrot.slane %v362, %v369
        %v372 = vunpack.c.l.s4 1983009808
        %v373 = vunpack.c.0.s8 %v372
        %v374 = vlaneseq
        %v375 = vshrl.u32 %v374, 7
        %v376 = vsub.s32 %v373, %v375
        %v377 = vrot.slane %v363, %v376
        %v378 = vcombine.low %v354, %v370
        %v379 = vcombine.high %v354, %v370
        %v381 = vunpack.c.l.s4 1934713408
        %v382 = vunpack.c.0.s8 %v381
        %v383 = vlaneseq
        %v384 = vshrl.u32 %v383, 7
        %v385 = vsub.s32 %v382, %v384
        %v386 = vrot.slane %v378, %v385
        %v388 = vunpack.c.l.s4 1934713408
        %v389 = vunpack.c.0.s8 %v388
        %v390 = vlaneseq
        %v391 = vshrl.u32 %v390, 7
        %v392 = vsub.s32 %v389, %v391
        %v393 = vrot.slane %v379, %v392
        %v394 = vcombine.low %v361, %v377
        %v395 = vcombine.high %v361, %v377
        %v397 = vunpack.c.l.s4 1934713408
        %v398 = vunpack.c.0.s8 %v397
        %v399 = vlaneseq
        %v400 = vshrl.u32 %v399, 7
        %v401 = vsub.s32 %v398, %v400
        %v402 = vrot.slane %v394, %v401
        %v404 = vunpack.c.l.s4 1934713408
        %v405 = vunpack.c.0.s8 %v404
        %v406 = vlaneseq
        %v407 = vshrl.u32 %v406, 7
        %v408 = vsub.s32 %v405, %v407
        %v409 = vrot.slane %v395, %v408
        %v410 = vcombine.high %v386, 0.0
        %v411 = vcombine.high %v393, 0.0
        %v412 = vcombine.high %v402, 0.0
        %v413 = vcombine.high %v409, 0.0
        %v414 = vcombine.low %v386, %v393
        %v416 = vunpack.c.l.s4 1983009808
        %v417 = vunpack.c.0.s8 %v416
        %v418 = vlaneseq
        %v419 = vshrl.u32 %v418, 7
        %v420 = vsub.s32 %v417, %v419
        %v421 = vrot.slane %v414, %v420
        %v422 = vcombine.low %v410, %v411
        %v424 = vunpack.c.l.s4 1983009808
        %v425 = vunpack.c.0.s8 %v424
        %v426 = vlaneseq
        %v427 = vshrl.u32 %v426, 7
        %v428 = vsub.s32 %v425, %v427
        %v429 = vrot.slane %v422, %v428
        %v430 = vcombine.low %v402, %v409
        %v432 = vunpack.c.l.s4 1983009808
        %v433 = vunpack.c.0.s8 %v432
        %v434 = vlaneseq
        %v435 = vshrl.u32 %v434, 7
        %v436 = vsub.s32 %v433, %v435
        %v437 = vrot.slane %v430, %v436
        %v438 = vcombine.low %v412, %v413
        %v440 = vunpack.c.l.s4 1983009808
        %v441 = vunpack.c.0.s8 %v440
        %v442 = vlaneseq
        %v443 = vshrl.u32 %v442, 7
        %v444 = vsub.s32 %v441, %v443
        %v445 = vrot.slane %v438, %v444
        %v446 = vcombine.low %v421, %v429
        %v447 = vcombine.high %v421, %v429
        %v449 = vunpack.c.l.s4 1934713408
        %v450 = vunpack.c.0.s8 %v449
        %v451 = vlaneseq
        %v452 = vshrl.u32 %v451, 7
        %v453 = vsub.s32 %v450, %v452
        %v454 = vrot.slane %v446, %v453
        %v456 = vunpack.c.l.s4 1934713408
        %v457 = vunpack.c.0.s8 %v456
        %v458 = vlaneseq
        %v459 = vshrl.u32 %v458, 7
        %v460 = vsub.s32 %v457, %v459
        %v461 = vrot.slane %v447, %v460
        %v462 = vcombine.low %v437, %v445
        %v463 = vcombine.high %v437, %v445
        %v465 = vunpack.c.l.s4 1934713408
        %v466 = vunpack.c.0.s8 %v465
        %v467 = vlaneseq
        %v468 = vshrl.u32 %v467, 7
        %v469 = vsub.s32 %v466, %v468
        %v470 = vrot.slane %v462, %v469
        %v472 = vunpack.c.l.s4 1934713408
        %v473 = vunpack.c.0.s8 %v472
        %v474 = vlaneseq
        %v475 = vshrl.u32 %v474, 7
        %v476 = vsub.s32 %v473, %v475
        %v477 = vrot.slane %v463, %v476
        %v478 = vcombine.low %v454, %v470
        %v479 = vcombine.high %v454, %v470
        %v480 = vcombine.low %v461, %v477
        %v481 = vcombine.high %v461, %v477
        %482 = vrot.lane.b32.xlu0 %v333, 96
        %v483 = vpop.permute.xlu0 %482
        %484 = vrot.lane.b32.xlu0 %v338, 96
        %v485 = vpop.permute.xlu0 %484
        %486 = vrot.lane.b32.xlu0 %v341, 96
        %v487 = vpop.permute.xlu0 %486
        %488 = vrot.lane.b32.xlu0 %v344, 96
        %v489 = vpop.permute.xlu0 %488
        %v494 = vcombine.low %v483, %v487
        %v495 = vcombine.high %v483, %v487
        %v497 = vunpack.c.l.s4 1983009808
        %v498 = vunpack.c.0.s8 %v497
        %v499 = vlaneseq
        %v500 = vshrl.u32 %v499, 7
        %v501 = vsub.s32 %v498, %v500
        %v502 = vrot.slane %v494, %v501
        %v504 = vunpack.c.l.s4 1983009808
        %v505 = vunpack.c.0.s8 %v504
        %v506 = vlaneseq
        %v507 = vshrl.u32 %v506, 7
        %v508 = vsub.s32 %v505, %v507
        %v509 = vrot.slane %v495, %v508
        %v510 = vcombine.low %v485, %v489
        %v511 = vcombine.high %v485, %v489
        %v513 = vunpack.c.l.s4 1983009808
        %v514 = vunpack.c.0.s8 %v513
        %v515 = vlaneseq
        %v516 = vshrl.u32 %v515, 7
        %v517 = vsub.s32 %v514, %v516
        %v518 = vrot.slane %v510, %v517
        %v520 = vunpack.c.l.s4 1983009808
        %v521 = vunpack.c.0.s8 %v520
        %v522 = vlaneseq
        %v523 = vshrl.u32 %v522, 7
        %v524 = vsub.s32 %v521, %v523
        %v525 = vrot.slane %v511, %v524
        %v526 = vcombine.low %v502, %v518
        %v527 = vcombine.high %v502, %v518
        %v529 = vunpack.c.l.s4 1934713408
        %v530 = vunpack.c.0.s8 %v529
        %v531 = vlaneseq
        %v532 = vshrl.u32 %v531, 7
        %v533 = vsub.s32 %v530, %v532
        %v534 = vrot.slane %v526, %v533
        %v536 = vunpack.c.l.s4 1934713408
        %v537 = vunpack.c.0.s8 %v536
        %v538 = vlaneseq
        %v539 = vshrl.u32 %v538, 7
        %v540 = vsub.s32 %v537, %v539
        %v541 = vrot.slane %v527, %v540
        %v542 = vcombine.low %v509, %v525
        %v543 = vcombine.high %v509, %v525
        %v545 = vunpack.c.l.s4 1934713408
        %v546 = vunpack.c.0.s8 %v545
        %v547 = vlaneseq
        %v548 = vshrl.u32 %v547, 7
        %v549 = vsub.s32 %v546, %v548
        %v550 = vrot.slane %v542, %v549
        %v552 = vunpack.c.l.s4 1934713408
        %v553 = vunpack.c.0.s8 %v552
        %v554 = vlaneseq
        %v555 = vshrl.u32 %v554, 7
        %v556 = vsub.s32 %v553, %v555
        %v557 = vrot.slane %v543, %v556
        %v558 = vcombine.high %v534, 0.0
        %v559 = vcombine.high %v541, 0.0
        %v560 = vcombine.high %v550, 0.0
        %v561 = vcombine.high %v557, 0.0
        %v562 = vcombine.low %v534, %v541
        %v564 = vunpack.c.l.s4 1983009808
        %v565 = vunpack.c.0.s8 %v564
        %v566 = vlaneseq
        %v567 = vshrl.u32 %v566, 7
        %v568 = vsub.s32 %v565, %v567
        %v569 = vrot.slane %v562, %v568
        %v570 = vcombine.low %v558, %v559
        %v572 = vunpack.c.l.s4 1983009808
        %v573 = vunpack.c.0.s8 %v572
        %v574 = vlaneseq
        %v575 = vshrl.u32 %v574, 7
        %v576 = vsub.s32 %v573, %v575
        %v577 = vrot.slane %v570, %v576
        %v578 = vcombine.low %v550, %v557
        %v580 = vunpack.c.l.s4 1983009808
        %v581 = vunpack.c.0.s8 %v580
        %v582 = vlaneseq
        %v583 = vshrl.u32 %v582, 7
        %v584 = vsub.s32 %v581, %v583
        %v585 = vrot.slane %v578, %v584
        %v586 = vcombine.low %v560, %v561
        %v588 = vunpack.c.l.s4 1983009808
        %v589 = vunpack.c.0.s8 %v588
        %v590 = vlaneseq
        %v591 = vshrl.u32 %v590, 7
        %v592 = vsub.s32 %v589, %v591
        %v593 = vrot.slane %v586, %v592
        %v594 = vcombine.low %v569, %v577
        %v595 = vcombine.high %v569, %v577
        %v597 = vunpack.c.l.s4 1934713408
        %v598 = vunpack.c.0.s8 %v597
        %v599 = vlaneseq
        %v600 = vshrl.u32 %v599, 7
        %v601 = vsub.s32 %v598, %v600
        %v602 = vrot.slane %v594, %v601
        %v604 = vunpack.c.l.s4 1934713408
        %v605 = vunpack.c.0.s8 %v604
        %v606 = vlaneseq
        %v607 = vshrl.u32 %v606, 7
        %v608 = vsub.s32 %v605, %v607
        %v609 = vrot.slane %v595, %v608
        %v610 = vcombine.low %v585, %v593
        %v611 = vcombine.high %v585, %v593
        %v613 = vunpack.c.l.s4 1934713408
        %v614 = vunpack.c.0.s8 %v613
        %v615 = vlaneseq
        %v616 = vshrl.u32 %v615, 7
        %v617 = vsub.s32 %v614, %v616
        %v618 = vrot.slane %v610, %v617
        %v620 = vunpack.c.l.s4 1934713408
        %v621 = vunpack.c.0.s8 %v620
        %v622 = vlaneseq
        %v623 = vshrl.u32 %v622, 7
        %v624 = vsub.s32 %v621, %v623
        %v625 = vrot.slane %v611, %v624
        %v626 = vcombine.low %v602, %v618
        %v627 = vcombine.high %v602, %v618
        %v628 = vcombine.low %v609, %v625
        %v629 = vcombine.high %v609, %v625
        %630 = vrot.lane.b32.xlu0 %v333, 64
        %v631 = vpop.permute.xlu0 %630
        %632 = vrot.lane.b32.xlu0 %v338, 64
        %v633 = vpop.permute.xlu0 %632
        %634 = vrot.lane.b32.xlu0 %v341, 64
        %v635 = vpop.permute.xlu0 %634
        %636 = vrot.lane.b32.xlu0 %v344, 64
        %v637 = vpop.permute.xlu0 %636
        %v642 = vcombine.low %v631, %v635
        %v643 = vcombine.high %v631, %v635
        %v645 = vunpack.c.l.s4 1983009808
        %v646 = vunpack.c.0.s8 %v645
        %v647 = vlaneseq
        %v648 = vshrl.u32 %v647, 7
        %v649 = vsub.s32 %v646, %v648
        %v650 = vrot.slane %v642, %v649
        %v652 = vunpack.c.l.s4 1983009808
        %v653 = vunpack.c.0.s8 %v652
        %v654 = vlaneseq
        %v655 = vshrl.u32 %v654, 7
        %v656 = vsub.s32 %v653, %v655
        %v657 = vrot.slane %v643, %v656
        %v658 = vcombine.low %v633, %v637
        %v659 = vcombine.high %v633, %v637
        %v661 = vunpack.c.l.s4 1983009808
        %v662 = vunpack.c.0.s8 %v661
        %v663 = vlaneseq
        %v664 = vshrl.u32 %v663, 7
        %v665 = vsub.s32 %v662, %v664
        %v666 = vrot.slane %v658, %v665
        %v668 = vunpack.c.l.s4 1983009808
        %v669 = vunpack.c.0.s8 %v668
        %v670 = vlaneseq
        %v671 = vshrl.u32 %v670, 7
        %v672 = vsub.s32 %v669, %v671
        %v673 = vrot.slane %v659, %v672
        %v674 = vcombine.low %v650, %v666
        %v675 = vcombine.high %v650, %v666
        %v677 = vunpack.c.l.s4 1934713408
        %v678 = vunpack.c.0.s8 %v677
        %v679 = vlaneseq
        %v680 = vshrl.u32 %v679, 7
        %v681 = vsub.s32 %v678, %v680
        %v682 = vrot.slane %v674, %v681
        %v684 = vunpack.c.l.s4 1934713408
        %v685 = vunpack.c.0.s8 %v684
        %v686 = vlaneseq
        %v687 = vshrl.u32 %v686, 7
        %v688 = vsub.s32 %v685, %v687
        %v689 = vrot.slane %v675, %v688
        %v690 = vcombine.low %v657, %v673
        %v691 = vcombine.high %v657, %v673
        %v693 = vunpack.c.l.s4 1934713408
        %v694 = vunpack.c.0.s8 %v693
        %v695 = vlaneseq
        %v696 = vshrl.u32 %v695, 7
        %v697 = vsub.s32 %v694, %v696
        %v698 = vrot.slane %v690, %v697
        %v700 = vunpack.c.l.s4 1934713408
        %v701 = vunpack.c.0.s8 %v700
        %v702 = vlaneseq
        %v703 = vshrl.u32 %v702, 7
        %v704 = vsub.s32 %v701, %v703
        %v705 = vrot.slane %v691, %v704
        %v706 = vcombine.high %v682, 0.0
        %v707 = vcombine.high %v689, 0.0
        %v708 = vcombine.high %v698, 0.0
        %v709 = vcombine.high %v705, 0.0
        %v710 = vcombine.low %v682, %v689
        %v712 = vunpack.c.l.s4 1983009808
        %v713 = vunpack.c.0.s8 %v712
        %v714 = vlaneseq
        %v715 = vshrl.u32 %v714, 7
        %v716 = vsub.s32 %v713, %v715
        %v717 = vrot.slane %v710, %v716
        %v718 = vcombine.low %v706, %v707
        %v720 = vunpack.c.l.s4 1983009808
        %v721 = vunpack.c.0.s8 %v720
        %v722 = vlaneseq
        %v723 = vshrl.u32 %v722, 7
        %v724 = vsub.s32 %v721, %v723
        %v725 = vrot.slane %v718, %v724
        %v726 = vcombine.low %v698, %v705
        %v728 = vunpack.c.l.s4 1983009808
        %v729 = vunpack.c.0.s8 %v728
        %v730 = vlaneseq
        %v731 = vshrl.u32 %v730, 7
        %v732 = vsub.s32 %v729, %v731
        %v733 = vrot.slane %v726, %v732
        %v734 = vcombine.low %v708, %v709
        %v736 = vunpack.c.l.s4 1983009808
        %v737 = vunpack.c.0.s8 %v736
        %v738 = vlaneseq
        %v739 = vshrl.u32 %v738, 7
        %v740 = vsub.s32 %v737, %v739
        %v741 = vrot.slane %v734, %v740
        %v742 = vcombine.low %v717, %v725
        %v743 = vcombine.high %v717, %v725
        %v745 = vunpack.c.l.s4 1934713408
        %v746 = vunpack.c.0.s8 %v745
        %v747 = vlaneseq
        %v748 = vshrl.u32 %v747, 7
        %v749 = vsub.s32 %v746, %v748
        %v750 = vrot.slane %v742, %v749
        %v752 = vunpack.c.l.s4 1934713408
        %v753 = vunpack.c.0.s8 %v752
        %v754 = vlaneseq
        %v755 = vshrl.u32 %v754, 7
        %v756 = vsub.s32 %v753, %v755
        %v757 = vrot.slane %v743, %v756
        %v758 = vcombine.low %v733, %v741
        %v759 = vcombine.high %v733, %v741
        %v761 = vunpack.c.l.s4 1934713408
        %v762 = vunpack.c.0.s8 %v761
        %v763 = vlaneseq
        %v764 = vshrl.u32 %v763, 7
        %v765 = vsub.s32 %v762, %v764
        %v766 = vrot.slane %v758, %v765
        %v768 = vunpack.c.l.s4 1934713408
        %v769 = vunpack.c.0.s8 %v768
        %v770 = vlaneseq
        %v771 = vshrl.u32 %v770, 7
        %v772 = vsub.s32 %v769, %v771
        %v773 = vrot.slane %v759, %v772
        %v774 = vcombine.low %v750, %v766
        %v775 = vcombine.high %v750, %v766
        %v776 = vcombine.low %v757, %v773
        %v777 = vcombine.high %v757, %v773
        %v778 = vld [vmem:[#allocation8] sm:$0xff]
        %v779 = vld [vmem:[#allocation8 + $0x8] sm:$0xff]
        %v780 = vld [vmem:[#allocation8 + $0x10] sm:$0xff]
        %v781 = vld [vmem:[#allocation8 + $0x18] sm:$0xff]
        %vm782 = vcmask 64512
        %v784 = vsel %vm782, %v478, 0
        %v787 = vsel %vm782, %v626, 0
        %789 = vmatprep.subr.mxu0 0.0
        %790 = vmatpush1.xpose.msra.mxu0 0.0
        %791 = vmatprep.subr.mxu0 0.0
        %792 = vmatpush1.xpose.msra.mxu0 0.0
        %793 = vmatprep.subr.mxu0 0.0
        %794 = vmatpush1.xpose.msra.mxu0 0.0
        %795 = vmatprep.subr.mxu0 0.0
        %796 = vmatpush1.xpose.msra.mxu0 0.0
        %797 = vmatprep.subr.mxu0 0.0
        %798 = vmatpush1.xpose.msra.mxu0 0.0
        %799 = vmatprep.subr.mxu0 0.0
        %800 = vmatpush1.xpose.msra.mxu0 0.0
        %801 = vmatprep.subr.mxu0 0.0
        %802 = vmatpush1.xpose.msra.mxu0 0.0
        %803 = vmatprep.subr.mxu0 0.0
        %804 = vmatpush1.xpose.msra.mxu0 0.0
        %805 = vmatprep.subr.mxu0 0.0
        %806 = vmatpush1.xpose.msra.mxu0 0.0
        %807 = vmatprep.subr.mxu0 0.0
        %808 = vmatpush1.xpose.msra.mxu0 0.0
        %809 = vmatprep.subr.mxu0 0.0
        %810 = vmatpush1.xpose.msra.mxu0 0.0
        %811 = vmatprep.subr.mxu0 0.0
        %812 = vmatpush1.xpose.msra.mxu0 0.0
        %813 = vmatprep.subr.mxu0 0.0
        %814 = vmatpush1.xpose.msra.mxu0 0.0
        %815 = vmatprep.subr.mxu0 0.0
        %816 = vmatpush1.xpose.msra.mxu0 0.0
        %817 = vmatprep.subr.mxu0 0.0
        %818 = vmatpush1.xpose.msra.mxu0 0.0
        %819 = vmatprep.subr.mxu0 0.0
        %820 = vmatpush1.xpose.msra.mxu0 %v787
        %821 = vmatprep.subr.mxu0 0.0
        %822 = vmatpush2.xpose.msra.mxu0 0.0
        %823 = vmatprep.subr.mxu0 0.0
        %824 = vmatpush2.xpose.msra.mxu0 0.0
        %825 = vmatprep.subr.mxu0 0.0
        %826 = vmatpush2.xpose.msra.mxu0 0.0
        %827 = vmatprep.subr.mxu0 0.0
        %828 = vmatpush2.xpose.msra.mxu0 0.0
        %829 = vmatprep.subr.mxu0 0.0
        %830 = vmatpush2.xpose.msra.mxu0 0.0
        %831 = vmatprep.subr.mxu0 0.0
        %832 = vmatpush2.xpose.msra.mxu0 0.0
        %833 = vmatprep.subr.mxu0 0.0
        %834 = vmatpush2.xpose.msra.mxu0 0.0
        %835 = vmatprep.subr.mxu0 0.0
        %836 = vmatpush2.xpose.msra.mxu0 0.0
        %837 = vmatprep.subr.mxu0 0.0
        %838 = vmatpush2.xpose.msra.mxu0 0.0
        %839 = vmatprep.subr.mxu0 0.0
        %840 = vmatpush2.xpose.msra.mxu0 0.0
        %841 = vmatprep.subr.mxu0 0.0
        %842 = vmatpush2.xpose.msra.mxu0 0.0
        %843 = vmatprep.subr.mxu0 0.0
        %844 = vmatpush2.xpose.msra.mxu0 0.0
        %845 = vmatprep.subr.mxu0 0.0
        %846 = vmatpush2.xpose.msra.mxu0 0.0
        %847 = vmatprep.subr.mxu0 0.0
        %848 = vmatpush2.xpose.msra.mxu0 0.0
        %849 = vmatprep.subr.mxu0 0.0
        %850 = vmatpush2.xpose.msra.mxu0 0.0
        %851 = vmatprep.subr.mxu0 0.0
        %852 = vmatpush2.xpose.msra.mxu0 0.0
        %853 = vmatprep.mubr.f32.mxu0 0.0
        %854 = vmatmul.mubr.f32.gmra.mxu0 %v784
        %v855 = vpop.f32.mrf.mxu0
        %v856 = vadd.f32 %v778, %v855
        %v857 = vpop.f32.mrf.mxu0
        %858 = vdwg.mxu0
        %v860 = vsel %vm782, %v479, 0
        %v863 = vsel %vm782, %v627, 0
        %865 = vmatprep.subr.mxu0 0.0
        %866 = vmatpush1.xpose.msra.mxu0 0.0
        %867 = vmatprep.subr.mxu0 0.0
        %868 = vmatpush1.xpose.msra.mxu0 0.0
        %869 = vmatprep.subr.mxu0 0.0
        %870 = vmatpush1.xpose.msra.mxu0 0.0
        %871 = vmatprep.subr.mxu0 0.0
        %872 = vmatpush1.xpose.msra.mxu0 0.0
        %873 = vmatprep.subr.mxu0 0.0
        %874 = vmatpush1.xpose.msra.mxu0 0.0
        %875 = vmatprep.subr.mxu0 0.0
        %876 = vmatpush1.xpose.msra.mxu0 0.0
        %877 = vmatprep.subr.mxu0 0.0
        %878 = vmatpush1.xpose.msra.mxu0 0.0
        %879 = vmatprep.subr.mxu0 0.0
        %880 = vmatpush1.xpose.msra.mxu0 0.0
        %881 = vmatprep.subr.mxu0 0.0
        %882 = vmatpush1.xpose.msra.mxu0 0.0
        %883 = vmatprep.subr.mxu0 0.0
        %884 = vmatpush1.xpose.msra.mxu0 0.0
        %885 = vmatprep.subr.mxu0 0.0
        %886 = vmatpush1.xpose.msra.mxu0 0.0
        %887 = vmatprep.subr.mxu0 0.0
        %888 = vmatpush1.xpose.msra.mxu0 0.0
        %889 = vmatprep.subr.mxu0 0.0
        %890 = vmatpush1.xpose.msra.mxu0 0.0
        %891 = vmatprep.subr.mxu0 0.0
        %892 = vmatpush1.xpose.msra.mxu0 0.0
        %893 = vmatprep.subr.mxu0 0.0
        %894 = vmatpush1.xpose.msra.mxu0 0.0
        %895 = vmatprep.subr.mxu0 0.0
        %896 = vmatpush1.xpose.msra.mxu0 %v863
        %897 = vmatprep.subr.mxu0 0.0
        %898 = vmatpush2.xpose.msra.mxu0 0.0
        %899 = vmatprep.subr.mxu0 0.0
        %900 = vmatpush2.xpose.msra.mxu0 0.0
        %901 = vmatprep.subr.mxu0 0.0
        %902 = vmatpush2.xpose.msra.mxu0 0.0
        %903 = vmatprep.subr.mxu0 0.0
        %904 = vmatpush2.xpose.msra.mxu0 0.0
        %905 = vmatprep.subr.mxu0 0.0
        %906 = vmatpush2.xpose.msra.mxu0 0.0
        %907 = vmatprep.subr.mxu0 0.0
        %908 = vmatpush2.xpose.msra.mxu0 0.0
        %909 = vmatprep.subr.mxu0 0.0
        %910 = vmatpush2.xpose.msra.mxu0 0.0
        %911 = vmatprep.subr.mxu0 0.0
        %912 = vmatpush2.xpose.msra.mxu0 0.0
        %913 = vmatprep.subr.mxu0 0.0
        %914 = vmatpush2.xpose.msra.mxu0 0.0
        %915 = vmatprep.subr.mxu0 0.0
        %916 = vmatpush2.xpose.msra.mxu0 0.0
        %917 = vmatprep.subr.mxu0 0.0
        %918 = vmatpush2.xpose.msra.mxu0 0.0
        %919 = vmatprep.subr.mxu0 0.0
        %920 = vmatpush2.xpose.msra.mxu0 0.0
        %921 = vmatprep.subr.mxu0 0.0
        %922 = vmatpush2.xpose.msra.mxu0 0.0
        %923 = vmatprep.subr.mxu0 0.0
        %924 = vmatpush2.xpose.msra.mxu0 0.0
        %925 = vmatprep.subr.mxu0 0.0
        %926 = vmatpush2.xpose.msra.mxu0 0.0
        %927 = vmatprep.subr.mxu0 0.0
        %928 = vmatpush2.xpose.msra.mxu0 0.0
        %929 = vmatprep.mubr.f32.mxu0 0.0
        %930 = vmatmul.mubr.f32.gmra.mxu0 %v860
        %v931 = vpop.f32.mrf.mxu0
        %v932 = vadd.f32 %v779, %v931
        %v933 = vpop.f32.mrf.mxu0
        %934 = vdwg.mxu0
        %v936 = vsel %vm782, %v480, 0
        %v939 = vsel %vm782, %v628, 0
        %941 = vmatprep.subr.mxu0 0.0
        %942 = vmatpush1.xpose.msra.mxu0 0.0
        %943 = vmatprep.subr.mxu0 0.0
        %944 = vmatpush1.xpose.msra.mxu0 0.0
        %945 = vmatprep.subr.mxu0 0.0
        %946 = vmatpush1.xpose.msra.mxu0 0.0
        %947 = vmatprep.subr.mxu0 0.0
        %948 = vmatpush1.xpose.msra.mxu0 0.0
        %949 = vmatprep.subr.mxu0 0.0
        %950 = vmatpush1.xpose.msra.mxu0 0.0
        %951 = vmatprep.subr.mxu0 0.0
        %952 = vmatpush1.xpose.msra.mxu0 0.0
        %953 = vmatprep.subr.mxu0 0.0
        %954 = vmatpush1.xpose.msra.mxu0 0.0
        %955 = vmatprep.subr.mxu0 0.0
        %956 = vmatpush1.xpose.msra.mxu0 0.0
        %957 = vmatprep.subr.mxu0 0.0
        %958 = vmatpush1.xpose.msra.mxu0 0.0
        %959 = vmatprep.subr.mxu0 0.0
        %960 = vmatpush1.xpose.msra.mxu0 0.0
        %961 = vmatprep.subr.mxu0 0.0
        %962 = vmatpush1.xpose.msra.mxu0 0.0
        %963 = vmatprep.subr.mxu0 0.0
        %964 = vmatpush1.xpose.msra.mxu0 0.0
        %965 = vmatprep.subr.mxu0 0.0
        %966 = vmatpush1.xpose.msra.mxu0 0.0
        %967 = vmatprep.subr.mxu0 0.0
        %968 = vmatpush1.xpose.msra.mxu0 0.0
        %969 = vmatprep.subr.mxu0 0.0
        %970 = vmatpush1.xpose.msra.mxu0 0.0
        %971 = vmatprep.subr.mxu0 0.0
        %972 = vmatpush1.xpose.msra.mxu0 %v939
        %973 = vmatprep.subr.mxu0 0.0
        %974 = vmatpush2.xpose.msra.mxu0 0.0
        %975 = vmatprep.subr.mxu0 0.0
        %976 = vmatpush2.xpose.msra.mxu0 0.0
        %977 = vmatprep.subr.mxu0 0.0
        %978 = vmatpush2.xpose.msra.mxu0 0.0
        %979 = vmatprep.subr.mxu0 0.0
        %980 = vmatpush2.xpose.msra.mxu0 0.0
        %981 = vmatprep.subr.mxu0 0.0
        %982 = vmatpush2.xpose.msra.mxu0 0.0
        %983 = vmatprep.subr.mxu0 0.0
        %984 = vmatpush2.xpose.msra.mxu0 0.0
        %985 = vmatprep.subr.mxu0 0.0
        %986 = vmatpush2.xpose.msra.mxu0 0.0
        %987 = vmatprep.subr.mxu0 0.0
        %988 = vmatpush2.xpose.msra.mxu0 0.0
        %989 = vmatprep.subr.mxu0 0.0
        %990 = vmatpush2.xpose.msra.mxu0 0.0
        %991 = vmatprep.subr.mxu0 0.0
        %992 = vmatpush2.xpose.msra.mxu0 0.0
        %993 = vmatprep.subr.mxu0 0.0
        %994 = vmatpush2.xpose.msra.mxu0 0.0
        %995 = vmatprep.subr.mxu0 0.0
        %996 = vmatpush2.xpose.msra.mxu0 0.0
        %997 = vmatprep.subr.mxu0 0.0
        %998 = vmatpush2.xpose.msra.mxu0 0.0
        %999 = vmatprep.subr.mxu0 0.0
        %1000 = vmatpush2.xpose.msra.mxu0 0.0
        %1001 = vmatprep.subr.mxu0 0.0
        %1002 = vmatpush2.xpose.msra.mxu0 0.0
        %1003 = vmatprep.subr.mxu0 0.0
        %1004 = vmatpush2.xpose.msra.mxu0 0.0
        %1005 = vmatprep.mubr.f32.mxu0 0.0
        %1006 = vmatmul.mubr.f32.gmra.mxu0 %v936
        %v1007 = vpop.f32.mrf.mxu0
        %v1008 = vadd.f32 %v780, %v1007
        %v1009 = vpop.f32.mrf.mxu0
        %1010 = vdwg.mxu0
        %v1012 = vsel %vm782, %v481, 0
        %v1015 = vsel %vm782, %v629, 0
        %1017 = vmatprep.subr.mxu0 0.0
        %1018 = vmatpush1.xpose.msra.mxu0 0.0
        %1019 = vmatprep.subr.mxu0 0.0
        %1020 = vmatpush1.xpose.msra.mxu0 0.0
        %1021 = vmatprep.subr.mxu0 0.0
        %1022 = vmatpush1.xpose.msra.mxu0 0.0
        %1023 = vmatprep.subr.mxu0 0.0
        %1024 = vmatpush1.xpose.msra.mxu0 0.0
        %1025 = vmatprep.subr.mxu0 0.0
        %1026 = vmatpush1.xpose.msra.mxu0 0.0
        %1027 = vmatprep.subr.mxu0 0.0
        %1028 = vmatpush1.xpose.msra.mxu0 0.0
        %1029 = vmatprep.subr.mxu0 0.0
        %1030 = vmatpush1.xpose.msra.mxu0 0.0
        %1031 = vmatprep.subr.mxu0 0.0
        %1032 = vmatpush1.xpose.msra.mxu0 0.0
        %1033 = vmatprep.subr.mxu0 0.0
        %1034 = vmatpush1.xpose.msra.mxu0 0.0
        %1035 = vmatprep.subr.mxu0 0.0
        %1036 = vmatpush1.xpose.msra.mxu0 0.0
        %1037 = vmatprep.subr.mxu0 0.0
        %1038 = vmatpush1.xpose.msra.mxu0 0.0
        %1039 = vmatprep.subr.mxu0 0.0
        %1040 = vmatpush1.xpose.msra.mxu0 0.0
        %1041 = vmatprep.subr.mxu0 0.0
        %1042 = vmatpush1.xpose.msra.mxu0 0.0
        %1043 = vmatprep.subr.mxu0 0.0
        %1044 = vmatpush1.xpose.msra.mxu0 0.0
        %1045 = vmatprep.subr.mxu0 0.0
        %1046 = vmatpush1.xpose.msra.mxu0 0.0
        %1047 = vmatprep.subr.mxu0 0.0
        %1048 = vmatpush1.xpose.msra.mxu0 %v1015
        %1049 = vmatprep.subr.mxu0 0.0
        %1050 = vmatpush2.xpose.msra.mxu0 0.0
        %1051 = vmatprep.subr.mxu0 0.0
        %1052 = vmatpush2.xpose.msra.mxu0 0.0
        %1053 = vmatprep.subr.mxu0 0.0
        %1054 = vmatpush2.xpose.msra.mxu0 0.0
        %1055 = vmatprep.subr.mxu0 0.0
        %1056 = vmatpush2.xpose.msra.mxu0 0.0
        %1057 = vmatprep.subr.mxu0 0.0
        %1058 = vmatpush2.xpose.msra.mxu0 0.0
        %1059 = vmatprep.subr.mxu0 0.0
        %1060 = vmatpush2.xpose.msra.mxu0 0.0
        %1061 = vmatprep.subr.mxu0 0.0
        %1062 = vmatpush2.xpose.msra.mxu0 0.0
        %1063 = vmatprep.subr.mxu0 0.0
        %1064 = vmatpush2.xpose.msra.mxu0 0.0
        %1065 = vmatprep.subr.mxu0 0.0
        %1066 = vmatpush2.xpose.msra.mxu0 0.0
        %1067 = vmatprep.subr.mxu0 0.0
        %1068 = vmatpush2.xpose.msra.mxu0 0.0
        %1069 = vmatprep.subr.mxu0 0.0
        %1070 = vmatpush2.xpose.msra.mxu0 0.0
        %1071 = vmatprep.subr.mxu0 0.0
        %1072 = vmatpush2.xpose.msra.mxu0 0.0
        %1073 = vmatprep.subr.mxu0 0.0
        %1074 = vmatpush2.xpose.msra.mxu0 0.0
        %1075 = vmatprep.subr.mxu0 0.0
        %1076 = vmatpush2.xpose.msra.mxu0 0.0
        %1077 = vmatprep.subr.mxu0 0.0
        %1078 = vmatpush2.xpose.msra.mxu0 0.0
        %1079 = vmatprep.subr.mxu0 0.0
        %1080 = vmatpush2.xpose.msra.mxu0 0.0
        %1081 = vmatprep.mubr.f32.mxu0 0.0
        %1082 = vmatmul.mubr.f32.gmra.mxu0 %v1012
        %v1083 = vpop.f32.mrf.mxu0
        %v1084 = vadd.f32 %v781, %v1083
        %v1085 = vpop.f32.mrf.mxu0
        %1086 = vdwg.mxu0
        %v1087 = vsel %vm782, %v856, -inf
        %1088 = vmax.xlane.f32.xlu0 %v1087
        %v1089 = vpop.xlane.xlu0 %1088
        %v1090 = vsel %vm782, %v932, -inf
        %1091 = vmax.xlane.f32.xlu0 %v1090
        %v1092 = vpop.xlane.xlu0 %1091
        %v1093 = vsel %vm782, %v1008, -inf
        %1094 = vmax.xlane.f32.xlu0 %v1093
        %v1095 = vpop.xlane.xlu0 %1094
        %v1096 = vsel %vm782, %v1084, -inf
        %1097 = vmax.xlane.f32.xlu0 %v1096
        %v1098 = vpop.xlane.xlu0 %1097
        %v1099 = vsub.f32 %v856, %v1089
        %v1100 = vsub.f32 %v932, %v1092
        %v1101 = vsub.f32 %v1008, %v1095
        %v1102 = vsub.f32 %v1084, %v1098
        %v1103 = vmul.f32 %v1099, 1.442695
        %v1104 = vpow.pop %v1103
        %v1105 = vmul.f32 %v1100, 1.442695
        %v1106 = vpow.pop %v1105
        %v1107 = vmul.f32 %v1101, 1.442695
        %v1108 = vpow.pop %v1107
        %v1109 = vmul.f32 %v1102, 1.442695
        %v1110 = vpow.pop %v1109
        %v1111 = vsel %vm782, %v1104, 0.0
        %1112 = vadd.xlane.f32.xlu0 %v1111
        %v1113 = vpop.xlane.xlu0 %1112
        %v1114 = vsel %vm782, %v1106, 0.0
        %1115 = vadd.xlane.f32.xlu0 %v1114
        %v1116 = vpop.xlane.xlu0 %1115
        %v1117 = vsel %vm782, %v1108, 0.0
        %1118 = vadd.xlane.f32.xlu0 %v1117
        %v1119 = vpop.xlane.xlu0 %1118
        %v1120 = vsel %vm782, %v1110, 0.0
        %1121 = vadd.xlane.f32.xlu0 %v1120
        %v1122 = vpop.xlane.xlu0 %1121
        %v1123 = vrcp.pop %v1113
        %v1124 = vmul.f32 %v1104, %v1123
        %v1125 = vrcp.pop %v1116
        %v1126 = vmul.f32 %v1106, %v1125
        %v1127 = vrcp.pop %v1119
        %v1128 = vmul.f32 %v1108, %v1127
        %v1129 = vrcp.pop %v1122
        %v1130 = vmul.f32 %v1110, %v1129
        %v1132 = vsel %vm782, %v1124, 0
        %1134 = vmatprep.subr.mxu0 0.0
        %1135 = vmatpush1.msra.mxu0 0.0
        %1136 = vmatprep.subr.mxu0 0.0
        %1137 = vmatpush1.msra.mxu0 0.0
        %1138 = vmatprep.subr.mxu0 0.0
        %1139 = vmatpush1.msra.mxu0 0.0
        %1140 = vmatprep.subr.mxu0 0.0
        %1141 = vmatpush1.msra.mxu0 0.0
        %1142 = vmatprep.subr.mxu0 0.0
        %1143 = vmatpush1.msra.mxu0 0.0
        %1144 = vmatprep.subr.mxu0 0.0
        %1145 = vmatpush1.msra.mxu0 0.0
        %1146 = vmatprep.subr.mxu0 0.0
        %1147 = vmatpush1.msra.mxu0 0.0
        %1148 = vmatprep.subr.mxu0 0.0
        %1149 = vmatpush1.msra.mxu0 0.0
        %1150 = vmatprep.subr.mxu0 0.0
        %1151 = vmatpush1.msra.mxu0 0.0
        %1152 = vmatprep.subr.mxu0 0.0
        %1153 = vmatpush1.msra.mxu0 0.0
        %1154 = vmatprep.subr.mxu0 0.0
        %1155 = vmatpush1.msra.mxu0 0.0
        %1156 = vmatprep.subr.mxu0 0.0
        %1157 = vmatpush1.msra.mxu0 0.0
        %1158 = vmatprep.subr.mxu0 0.0
        %1159 = vmatpush1.msra.mxu0 0.0
        %1160 = vmatprep.subr.mxu0 0.0
        %1161 = vmatpush1.msra.mxu0 0.0
        %1162 = vmatprep.subr.mxu0 0.0
        %1163 = vmatpush1.msra.mxu0 0.0
        %1164 = vmatprep.subr.mxu0 0.0
        %1165 = vmatpush1.msra.mxu0 %v774
        %1166 = vmatprep.subr.mxu0 0.0
        %1167 = vmatpush2.msra.mxu0 0.0
        %1168 = vmatprep.subr.mxu0 0.0
        %1169 = vmatpush2.msra.mxu0 0.0
        %1170 = vmatprep.subr.mxu0 0.0
        %1171 = vmatpush2.msra.mxu0 0.0
        %1172 = vmatprep.subr.mxu0 0.0
        %1173 = vmatpush2.msra.mxu0 0.0
        %1174 = vmatprep.subr.mxu0 0.0
        %1175 = vmatpush2.msra.mxu0 0.0
        %1176 = vmatprep.subr.mxu0 0.0
        %1177 = vmatpush2.msra.mxu0 0.0
        %1178 = vmatprep.subr.mxu0 0.0
        %1179 = vmatpush2.msra.mxu0 0.0
        %1180 = vmatprep.subr.mxu0 0.0
        %1181 = vmatpush2.msra.mxu0 0.0
        %1182 = vmatprep.subr.mxu0 0.0
        %1183 = vmatpush2.msra.mxu0 0.0
        %1184 = vmatprep.subr.mxu0 0.0
        %1185 = vmatpush2.msra.mxu0 0.0
        %1186 = vmatprep.subr.mxu0 0.0
        %1187 = vmatpush2.msra.mxu0 0.0
        %1188 = vmatprep.subr.mxu0 0.0
        %1189 = vmatpush2.msra.mxu0 0.0
        %1190 = vmatprep.subr.mxu0 0.0
        %1191 = vmatpush2.msra.mxu0 0.0
        %1192 = vmatprep.subr.mxu0 0.0
        %1193 = vmatpush2.msra.mxu0 0.0
        %1194 = vmatprep.subr.mxu0 0.0
        %1195 = vmatpush2.msra.mxu0 0.0
        %1196 = vmatprep.subr.mxu0 0.0
        %1197 = vmatpush2.msra.mxu0 0.0
        %1198 = vmatprep.mubr.f32.mxu0 0.0
        %1199 = vmatmul.mubr.f32.gmra.mxu0 %v1132
        %v1200 = vpop.f32.mrf.mxu0
        %v1201 = vadd.f32 0.0, %v1200
        %v1202 = vpop.f32.mrf.mxu0
        %1203 = vdwg.mxu0
        %v1205 = vsel %vm782, %v1126, 0
        %1207 = vmatprep.subr.mxu0 0.0
        %1208 = vmatpush1.msra.mxu0 0.0
        %1209 = vmatprep.subr.mxu0 0.0
        %1210 = vmatpush1.msra.mxu0 0.0
        %1211 = vmatprep.subr.mxu0 0.0
        %1212 = vmatpush1.msra.mxu0 0.0
        %1213 = vmatprep.subr.mxu0 0.0
        %1214 = vmatpush1.msra.mxu0 0.0
        %1215 = vmatprep.subr.mxu0 0.0
        %1216 = vmatpush1.msra.mxu0 0.0
        %1217 = vmatprep.subr.mxu0 0.0
        %1218 = vmatpush1.msra.mxu0 0.0
        %1219 = vmatprep.subr.mxu0 0.0
        %1220 = vmatpush1.msra.mxu0 0.0
        %1221 = vmatprep.subr.mxu0 0.0
        %1222 = vmatpush1.msra.mxu0 0.0
        %1223 = vmatprep.subr.mxu0 0.0
        %1224 = vmatpush1.msra.mxu0 0.0
        %1225 = vmatprep.subr.mxu0 0.0
        %1226 = vmatpush1.msra.mxu0 0.0
        %1227 = vmatprep.subr.mxu0 0.0
        %1228 = vmatpush1.msra.mxu0 0.0
        %1229 = vmatprep.subr.mxu0 0.0
        %1230 = vmatpush1.msra.mxu0 0.0
        %1231 = vmatprep.subr.mxu0 0.0
        %1232 = vmatpush1.msra.mxu0 0.0
        %1233 = vmatprep.subr.mxu0 0.0
        %1234 = vmatpush1.msra.mxu0 0.0
        %1235 = vmatprep.subr.mxu0 0.0
        %1236 = vmatpush1.msra.mxu0 0.0
        %1237 = vmatprep.subr.mxu0 0.0
        %1238 = vmatpush1.msra.mxu0 %v775
        %1239 = vmatprep.subr.mxu0 0.0
        %1240 = vmatpush2.msra.mxu0 0.0
        %1241 = vmatprep.subr.mxu0 0.0
        %1242 = vmatpush2.msra.mxu0 0.0
        %1243 = vmatprep.subr.mxu0 0.0
        %1244 = vmatpush2.msra.mxu0 0.0
        %1245 = vmatprep.subr.mxu0 0.0
        %1246 = vmatpush2.msra.mxu0 0.0
        %1247 = vmatprep.subr.mxu0 0.0
        %1248 = vmatpush2.msra.mxu0 0.0
        %1249 = vmatprep.subr.mxu0 0.0
        %1250 = vmatpush2.msra.mxu0 0.0
        %1251 = vmatprep.subr.mxu0 0.0
        %1252 = vmatpush2.msra.mxu0 0.0
        %1253 = vmatprep.subr.mxu0 0.0
        %1254 = vmatpush2.msra.mxu0 0.0
        %1255 = vmatprep.subr.mxu0 0.0
        %1256 = vmatpush2.msra.mxu0 0.0
        %1257 = vmatprep.subr.mxu0 0.0
        %1258 = vmatpush2.msra.mxu0 0.0
        %1259 = vmatprep.subr.mxu0 0.0
        %1260 = vmatpush2.msra.mxu0 0.0
        %1261 = vmatprep.subr.mxu0 0.0
        %1262 = vmatpush2.msra.mxu0 0.0
        %1263 = vmatprep.subr.mxu0 0.0
        %1264 = vmatpush2.msra.mxu0 0.0
        %1265 = vmatprep.subr.mxu0 0.0
        %1266 = vmatpush2.msra.mxu0 0.0
        %1267 = vmatprep.subr.mxu0 0.0
        %1268 = vmatpush2.msra.mxu0 0.0
        %1269 = vmatprep.subr.mxu0 0.0
        %1270 = vmatpush2.msra.mxu0 0.0
        %1271 = vmatprep.mubr.f32.mxu0 0.0
        %1272 = vmatmul.mubr.f32.gmra.mxu0 %v1205
        %v1273 = vpop.f32.mrf.mxu0
        %v1274 = vadd.f32 0.0, %v1273
        %v1275 = vpop.f32.mrf.mxu0
        %1276 = vdwg.mxu0
        %v1278 = vsel %vm782, %v1128, 0
        %1280 = vmatprep.subr.mxu0 0.0
        %1281 = vmatpush1.msra.mxu0 0.0
        %1282 = vmatprep.subr.mxu0 0.0
        %1283 = vmatpush1.msra.mxu0 0.0
        %1284 = vmatprep.subr.mxu0 0.0
        %1285 = vmatpush1.msra.mxu0 0.0
        %1286 = vmatprep.subr.mxu0 0.0
        %1287 = vmatpush1.msra.mxu0 0.0
        %1288 = vmatprep.subr.mxu0 0.0
        %1289 = vmatpush1.msra.mxu0 0.0
        %1290 = vmatprep.subr.mxu0 0.0
        %1291 = vmatpush1.msra.mxu0 0.0
        %1292 = vmatprep.subr.mxu0 0.0
        %1293 = vmatpush1.msra.mxu0 0.0
        %1294 = vmatprep.subr.mxu0 0.0
        %1295 = vmatpush1.msra.mxu0 0.0
        %1296 = vmatprep.subr.mxu0 0.0
        %1297 = vmatpush1.msra.mxu0 0.0
        %1298 = vmatprep.subr.mxu0 0.0
        %1299 = vmatpush1.msra.mxu0 0.0
        %1300 = vmatprep.subr.mxu0 0.0
        %1301 = vmatpush1.msra.mxu0 0.0
        %1302 = vmatprep.subr.mxu0 0.0
        %1303 = vmatpush1.msra.mxu0 0.0
        %1304 = vmatprep.subr.mxu0 0.0
        %1305 = vmatpush1.msra.mxu0 0.0
        %1306 = vmatprep.subr.mxu0 0.0
        %1307 = vmatpush1.msra.mxu0 0.0
        %1308 = vmatprep.subr.mxu0 0.0
        %1309 = vmatpush1.msra.mxu0 0.0
        %1310 = vmatprep.subr.mxu0 0.0
        %1311 = vmatpush1.msra.mxu0 %v776
        %1312 = vmatprep.subr.mxu0 0.0
        %1313 = vmatpush2.msra.mxu0 0.0
        %1314 = vmatprep.subr.mxu0 0.0
        %1315 = vmatpush2.msra.mxu0 0.0
        %1316 = vmatprep.subr.mxu0 0.0
        %1317 = vmatpush2.msra.mxu0 0.0
        %1318 = vmatprep.subr.mxu0 0.0
        %1319 = vmatpush2.msra.mxu0 0.0
        %1320 = vmatprep.subr.mxu0 0.0
        %1321 = vmatpush2.msra.mxu0 0.0
        %1322 = vmatprep.subr.mxu0 0.0
        %1323 = vmatpush2.msra.mxu0 0.0
        %1324 = vmatprep.subr.mxu0 0.0
        %1325 = vmatpush2.msra.mxu0 0.0
        %1326 = vmatprep.subr.mxu0 0.0
        %1327 = vmatpush2.msra.mxu0 0.0
        %1328 = vmatprep.subr.mxu0 0.0
        %1329 = vmatpush2.msra.mxu0 0.0
        %1330 = vmatprep.subr.mxu0 0.0
        %1331 = vmatpush2.msra.mxu0 0.0
        %1332 = vmatprep.subr.mxu0 0.0
        %1333 = vmatpush2.msra.mxu0 0.0
        %1334 = vmatprep.subr.mxu0 0.0
        %1335 = vmatpush2.msra.mxu0 0.0
        %1336 = vmatprep.subr.mxu0 0.0
        %1337 = vmatpush2.msra.mxu0 0.0
        %1338 = vmatprep.subr.mxu0 0.0
        %1339 = vmatpush2.msra.mxu0 0.0
        %1340 = vmatprep.subr.mxu0 0.0
        %1341 = vmatpush2.msra.mxu0 0.0
        %1342 = vmatprep.subr.mxu0 0.0
        %1343 = vmatpush2.msra.mxu0 0.0
        %1344 = vmatprep.mubr.f32.mxu0 0.0
        %1345 = vmatmul.mubr.f32.gmra.mxu0 %v1278
        %v1346 = vpop.f32.mrf.mxu0
        %v1347 = vadd.f32 0.0, %v1346
        %v1348 = vpop.f32.mrf.mxu0
        %1349 = vdwg.mxu0
        %v1351 = vsel %vm782, %v1130, 0
        %1353 = vmatprep.subr.mxu0 0.0
        %1354 = vmatpush1.msra.mxu0 0.0
        %1355 = vmatprep.subr.mxu0 0.0
        %1356 = vmatpush1.msra.mxu0 0.0
        %1357 = vmatprep.subr.mxu0 0.0
        %1358 = vmatpush1.msra.mxu0 0.0
        %1359 = vmatprep.subr.mxu0 0.0
        %1360 = vmatpush1.msra.mxu0 0.0
        %1361 = vmatprep.subr.mxu0 0.0
        %1362 = vmatpush1.msra.mxu0 0.0
        %1363 = vmatprep.subr.mxu0 0.0
        %1364 = vmatpush1.msra.mxu0 0.0
        %1365 = vmatprep.subr.mxu0 0.0
        %1366 = vmatpush1.msra.mxu0 0.0
        %1367 = vmatprep.subr.mxu0 0.0
        %1368 = vmatpush1.msra.mxu0 0.0
        %1369 = vmatprep.subr.mxu0 0.0
        %1370 = vmatpush1.msra.mxu0 0.0
        %1371 = vmatprep.subr.mxu0 0.0
        %1372 = vmatpush1.msra.mxu0 0.0
        %1373 = vmatprep.subr.mxu0 0.0
        %1374 = vmatpush1.msra.mxu0 0.0
        %1375 = vmatprep.subr.mxu0 0.0
        %1376 = vmatpush1.msra.mxu0 0.0
        %1377 = vmatprep.subr.mxu0 0.0
        %1378 = vmatpush1.msra.mxu0 0.0
        %1379 = vmatprep.subr.mxu0 0.0
        %1380 = vmatpush1.msra.mxu0 0.0
        %1381 = vmatprep.subr.mxu0 0.0
        %1382 = vmatpush1.msra.mxu0 0.0
        %1383 = vmatprep.subr.mxu0 0.0
        %1384 = vmatpush1.msra.mxu0 %v777
        %1385 = vmatprep.subr.mxu0 0.0
        %1386 = vmatpush2.msra.mxu0 0.0
        %1387 = vmatprep.subr.mxu0 0.0
        %1388 = vmatpush2.msra.mxu0 0.0
        %1389 = vmatprep.subr.mxu0 0.0
        %1390 = vmatpush2.msra.mxu0 0.0
        %1391 = vmatprep.subr.mxu0 0.0
        %1392 = vmatpush2.msra.mxu0 0.0
        %1393 = vmatprep.subr.mxu0 0.0
        %1394 = vmatpush2.msra.mxu0 0.0
        %1395 = vmatprep.subr.mxu0 0.0
        %1396 = vmatpush2.msra.mxu0 0.0
        %1397 = vmatprep.subr.mxu0 0.0
        %1398 = vmatpush2.msra.mxu0 0.0
        %1399 = vmatprep.subr.mxu0 0.0
        %1400 = vmatpush2.msra.mxu0 0.0
        %1401 = vmatprep.subr.mxu0 0.0
        %1402 = vmatpush2.msra.mxu0 0.0
        %1403 = vmatprep.subr.mxu0 0.0
        %1404 = vmatpush2.msra.mxu0 0.0
        %1405 = vmatprep.subr.mxu0 0.0
        %1406 = vmatpush2.msra.mxu0 0.0
        %1407 = vmatprep.subr.mxu0 0.0
        %1408 = vmatpush2.msra.mxu0 0.0
        %1409 = vmatprep.subr.mxu0 0.0
        %1410 = vmatpush2.msra.mxu0 0.0
        %1411 = vmatprep.subr.mxu0 0.0
        %1412 = vmatpush2.msra.mxu0 0.0
        %1413 = vmatprep.subr.mxu0 0.0
        %1414 = vmatpush2.msra.mxu0 0.0
        %1415 = vmatprep.subr.mxu0 0.0
        %1416 = vmatpush2.msra.mxu0 0.0
        %1417 = vmatprep.mubr.f32.mxu0 0.0
        %1418 = vmatmul.mubr.f32.gmra.mxu0 %v1351
        %v1419 = vpop.f32.mrf.mxu0
        %v1420 = vadd.f32 0.0, %v1419
        %v1421 = vpop.f32.mrf.mxu0
        %1422 = vdwg.mxu0
        %v1423 = vcombine.low %v1201, %v1347
        %v1424 = vcombine.high %v1201, %v1347
        %v1426 = vunpack.c.l.s4 1983009808
        %v1427 = vunpack.c.0.s8 %v1426
        %v1428 = vlaneseq
        %v1429 = vshrl.u32 %v1428, 7
        %v1430 = vsub.s32 %v1427, %v1429
        %v1431 = vrot.slane %v1423, %v1430
        %v1433 = vunpack.c.l.s4 1983009808
        %v1434 = vunpack.c.0.s8 %v1433
        %v1435 = vlaneseq
        %v1436 = vshrl.u32 %v1435, 7
        %v1437 = vsub.s32 %v1434, %v1436
        %v1438 = vrot.slane %v1424, %v1437
        %v1439 = vcombine.low %v1274, %v1420
        %v1440 = vcombine.high %v1274, %v1420
        %v1442 = vunpack.c.l.s4 1983009808
        %v1443 = vunpack.c.0.s8 %v1442
        %v1444 = vlaneseq
        %v1445 = vshrl.u32 %v1444, 7
        %v1446 = vsub.s32 %v1443, %v1445
        %v1447 = vrot.slane %v1439, %v1446
        %v1449 = vunpack.c.l.s4 1983009808
        %v1450 = vunpack.c.0.s8 %v1449
        %v1451 = vlaneseq
        %v1452 = vshrl.u32 %v1451, 7
        %v1453 = vsub.s32 %v1450, %v1452
        %v1454 = vrot.slane %v1440, %v1453
        %v1455 = vcombine.low %v1431, %v1447
        %v1456 = vcombine.high %v1431, %v1447
        %v1458 = vunpack.c.l.s4 1934713408
        %v1459 = vunpack.c.0.s8 %v1458
        %v1460 = vlaneseq
        %v1461 = vshrl.u32 %v1460, 7
        %v1462 = vsub.s32 %v1459, %v1461
        %v1463 = vrot.slane %v1455, %v1462
        %v1465 = vunpack.c.l.s4 1934713408
        %v1466 = vunpack.c.0.s8 %v1465
        %v1467 = vlaneseq
        %v1468 = vshrl.u32 %v1467, 7
        %v1469 = vsub.s32 %v1466, %v1468
        %v1470 = vrot.slane %v1456, %v1469
        %v1471 = vcombine.low %v1438, %v1454
        %v1472 = vcombine.high %v1438, %v1454
        %v1474 = vunpack.c.l.s4 1934713408
        %v1475 = vunpack.c.0.s8 %v1474
        %v1476 = vlaneseq
        %v1477 = vshrl.u32 %v1476, 7
        %v1478 = vsub.s32 %v1475, %v1477
        %v1479 = vrot.slane %v1471, %v1478
        %v1481 = vunpack.c.l.s4 1934713408
        %v1482 = vunpack.c.0.s8 %v1481
        %v1483 = vlaneseq
        %v1484 = vshrl.u32 %v1483, 7
        %v1485 = vsub.s32 %v1482, %v1484
        %v1486 = vrot.slane %v1472, %v1485
        %v1487 = vcombine.high %v1463, 0.0
        %v1488 = vcombine.high %v1470, 0.0
        %v1489 = vcombine.high %v1479, 0.0
        %v1490 = vcombine.high %v1486, 0.0
        %v1491 = vcombine.low %v1463, %v1470
        %v1493 = vunpack.c.l.s4 1983009808
        %v1494 = vunpack.c.0.s8 %v1493
        %v1495 = vlaneseq
        %v1496 = vshrl.u32 %v1495, 7
        %v1497 = vsub.s32 %v1494, %v1496
        %v1498 = vrot.slane %v1491, %v1497
        %v1499 = vcombine.low %v1487, %v1488
        %v1501 = vunpack.c.l.s4 1983009808
        %v1502 = vunpack.c.0.s8 %v1501
        %v1503 = vlaneseq
        %v1504 = vshrl.u32 %v1503, 7
        %v1505 = vsub.s32 %v1502, %v1504
        %v1506 = vrot.slane %v1499, %v1505
        %v1507 = vcombine.low %v1479, %v1486
        %v1509 = vunpack.c.l.s4 1983009808
        %v1510 = vunpack.c.0.s8 %v1509
        %v1511 = vlaneseq
        %v1512 = vshrl.u32 %v1511, 7
        %v1513 = vsub.s32 %v1510, %v1512
        %v1514 = vrot.slane %v1507, %v1513
        %v1515 = vcombine.low %v1489, %v1490
        %v1517 = vunpack.c.l.s4 1983009808
        %v1518 = vunpack.c.0.s8 %v1517
        %v1519 = vlaneseq
        %v1520 = vshrl.u32 %v1519, 7
        %v1521 = vsub.s32 %v1518, %v1520
        %v1522 = vrot.slane %v1515, %v1521
        %v1523 = vcombine.low %v1498, %v1506
        %v1524 = vcombine.high %v1498, %v1506
        %v1526 = vunpack.c.l.s4 1934713408
        %v1527 = vunpack.c.0.s8 %v1526
        %v1528 = vlaneseq
        %v1529 = vshrl.u32 %v1528, 7
        %v1530 = vsub.s32 %v1527, %v1529
        %v1531 = vrot.slane %v1523, %v1530
        %v1533 = vunpack.c.l.s4 1934713408
        %v1534 = vunpack.c.0.s8 %v1533
        %v1535 = vlaneseq
        %v1536 = vshrl.u32 %v1535, 7
        %v1537 = vsub.s32 %v1534, %v1536
        %v1538 = vrot.slane %v1524, %v1537
        %v1539 = vcombine.low %v1514, %v1522
        %v1540 = vcombine.high %v1514, %v1522
        %v1542 = vunpack.c.l.s4 1934713408
        %v1543 = vunpack.c.0.s8 %v1542
        %v1544 = vlaneseq
        %v1545 = vshrl.u32 %v1544, 7
        %v1546 = vsub.s32 %v1543, %v1545
        %v1547 = vrot.slane %v1539, %v1546
        %v1549 = vunpack.c.l.s4 1934713408
        %v1550 = vunpack.c.0.s8 %v1549
        %v1551 = vlaneseq
        %v1552 = vshrl.u32 %v1551, 7
        %v1553 = vsub.s32 %v1550, %v1552
        %v1554 = vrot.slane %v1540, %v1553
        %v1555 = vcombine.low %v1531, %v1547
        %v1556 = vcombine.high %v1531, %v1547
        %v1557 = vcombine.low %v1538, %v1554
        %v1558 = vcombine.high %v1538, %v1554
        %1560 = vrot.lane.b32.xlu0 %v1556, 8
        %v1561 = vpop.permute.xlu0 %1560
        %1564 = vrot.lane.b32.xlu0 %v1557, 16
        %v1565 = vpop.permute.xlu0 %1564
        %1568 = vrot.lane.b32.xlu0 %v1558, 24
        %v1569 = vpop.permute.xlu0 %1568
        %v1571 = vsel %vm782, %v1555, %v1561
        %vm1572 = vcmask 130048
        %v1573 = vsel %vm1572, %v1571, %v1565
        %vm1574 = vcmask 195584
        %v1575 = vsel %vm1574, %v1573, %v1569
        %v1576 = vld [vmem:[#allocation7] sm:$0xff]
        %v1577 = vld [vmem:[#allocation7 + $0x8] sm:$0xff]
        %v1578 = vld [vmem:[#allocation7 + $0x10] sm:$0xff]
        %v1579 = vld [vmem:[#allocation7 + $0x18] sm:$0xff]
        %v1581 = vsel %vm262, %v1575, 0
        %1583 = vmatprep.subr.mxu0 0.0
        %1584 = vmatpush1.msra.mxu0 0.0
        %1585 = vmatprep.subr.mxu0 0.0
        %1586 = vmatpush1.msra.mxu0 0.0
        %1587 = vmatprep.subr.mxu0 0.0
        %1588 = vmatpush1.msra.mxu0 0.0
        %1589 = vmatprep.subr.mxu0 0.0
        %1590 = vmatpush1.msra.mxu0 0.0
        %1591 = vmatprep.subr.mxu0 0.0
        %1592 = vmatpush1.msra.mxu0 0.0
        %1593 = vmatprep.subr.mxu0 0.0
        %1594 = vmatpush1.msra.mxu0 0.0
        %1595 = vmatprep.subr.mxu0 0.0
        %1596 = vmatpush1.msra.mxu0 0.0
        %1597 = vmatprep.subr.mxu0 0.0
        %1598 = vmatpush1.msra.mxu0 0.0
        %1599 = vmatprep.subr.mxu0 0.0
        %1600 = vmatpush1.msra.mxu0 0.0
        %1601 = vmatprep.subr.mxu0 0.0
        %1602 = vmatpush1.msra.mxu0 0.0
        %1603 = vmatprep.subr.mxu0 0.0
        %1604 = vmatpush1.msra.mxu0 0.0
        %1605 = vmatprep.subr.mxu0 0.0
        %1606 = vmatpush1.msra.mxu0 0.0
        %1607 = vmatprep.subr.mxu0 0.0
        %1608 = vmatpush1.msra.mxu0 %v1579
        %1609 = vmatprep.subr.mxu0 0.0
        %1610 = vmatpush1.msra.mxu0 %v1578
        %1611 = vmatprep.subr.mxu0 0.0
        %1612 = vmatpush1.msra.mxu0 %v1577
        %1613 = vmatprep.subr.mxu0 0.0
        %1614 = vmatpush1.msra.mxu0 %v1576
        %1615 = vmatprep.subr.mxu0 0.0
        %1616 = vmatpush2.msra.mxu0 0.0
        %1617 = vmatprep.subr.mxu0 0.0
        %1618 = vmatpush2.msra.mxu0 0.0
        %1619 = vmatprep.subr.mxu0 0.0
        %1620 = vmatpush2.msra.mxu0 0.0
        %1621 = vmatprep.subr.mxu0 0.0
        %1622 = vmatpush2.msra.mxu0 0.0
        %1623 = vmatprep.subr.mxu0 0.0
        %1624 = vmatpush2.msra.mxu0 0.0
        %1625 = vmatprep.subr.mxu0 0.0
        %1626 = vmatpush2.msra.mxu0 0.0
        %1627 = vmatprep.subr.mxu0 0.0
        %1628 = vmatpush2.msra.mxu0 0.0
        %1629 = vmatprep.subr.mxu0 0.0
        %1630 = vmatpush2.msra.mxu0 0.0
        %1631 = vmatprep.subr.mxu0 0.0
        %1632 = vmatpush2.msra.mxu0 0.0
        %1633 = vmatprep.subr.mxu0 0.0
        %1634 = vmatpush2.msra.mxu0 0.0
        %1635 = vmatprep.subr.mxu0 0.0
        %1636 = vmatpush2.msra.mxu0 0.0
        %1637 = vmatprep.subr.mxu0 0.0
        %1638 = vmatpush2.msra.mxu0 0.0
        %1639 = vmatprep.subr.mxu0 0.0
        %1640 = vmatpush2.msra.mxu0 0.0
        %1641 = vmatprep.subr.mxu0 0.0
        %1642 = vmatpush2.msra.mxu0 0.0
        %1643 = vmatprep.subr.mxu0 0.0
        %1644 = vmatpush2.msra.mxu0 0.0
        %1645 = vmatprep.subr.mxu0 0.0
        %1646 = vmatpush2.msra.mxu0 0.0
        %1647 = vmatprep.mubr.f32.mxu0 0.0
        %1648 = vmatmul.mubr.f32.gmra.mxu0 %v1581
        %v1649 = vpop.f32.mrf.mxu0
        %v1650 = vadd.f32 0.0, %v1649
        %v1651 = vpop.f32.mrf.mxu0
        %1652 = vdwg.mxu0
        %1653 = vst.msk [vmem:[%s256] sm:$0xff] %vm262, %v1650
        %s1654 = sand.u32 %s120, 1
        %s1655 = scalar_lea.sflag [#allocation4], %s1654
        %s1656 = sand.u32 %s120, 1
        %s1657 = smul.addr %s1656, 8
        %s1658 = scalar_lea.vmem [#allocation10], %s1657
        // Predicated region
        $region53: #{tpu_custom_call.1} parent=35 // pred_check
          %p1659 = pneg %p130
        $region54: #{tpu_custom_call.1} parent=35 // pred_check_branch
          %1661 = sbr.rel (%p1659) target = $region56
        $region55: #{tpu_custom_call.1} parent=35 // pred_region
          %s1663 = ssub.s32 128, 128
          %1664 = vsyncadd %s1655, %s1663
          %s1665 = smul.addr %s23, 128
          %s1666 = scalar_lea.hbm %s4, %s1665
          %s1668 = sshll.u32 %s1658, 4
          %s1669 = int_to_ptr.vmem [resolvable:$true] %s1668
          %1671 = dma.vmem_to_hbm [thread:$0]  %s1669, 128, %s1666, %s1655
        $region56: #{tpu_custom_call.1} parent=35 // pred_fallthru
          _
      $region36: #{tpu_custom_call.1} parent=5 // pred_fallthru
        _
      %p1672 = scmp.le.s32.totalorder 2, %s18
      // Predicated region
      $region57: #{tpu_custom_call.1} parent=5 // pred_check
        %p1673 = pneg %p1672
      $region58: #{tpu_custom_call.1} parent=5 // pred_check_branch
        %1675 = sbr.rel (%p1673) target = $region60
      $region59: #{tpu_custom_call.1} parent=5 // pred_region
        %s1676 = ssub.s32 %s18, 2
        // Predicated region
        $region61: #{tpu_custom_call.1} parent=59 // pred_check
          %p1677 = pneg %p136
        $region62: #{tpu_custom_call.1} parent=59 // pred_check_branch
          %1679 = sbr.rel (%p1677) target = $region64
        $region63: #{tpu_custom_call.1} parent=59 // pred_region
          %s1680 = sand.u32 %s121, 1
          %s1681 = scalar_lea.sflag [#allocation4], %s1680
          %s1682 = sand.u32 %s121, 1
          %s1683 = smul.addr %s1682, 8
          %s1684 = scalar_lea.vmem [#allocation10], %s1683
          %1685 = dma.done %s1681, 128
        $region64: #{tpu_custom_call.1} parent=59 // pred_fallthru
          _
      $region60: #{tpu_custom_call.1} parent=5 // pred_fallthru
        _
    $region6: #{tpu_custom_call.1} parent=1 // loop_footer
      %s22 = sadd.s32 1, %s18
    $region7: #{tpu_custom_call.1} parent=1 // loop_footer_branch
      %17 = sbr.rel target = $region3
    $region8: #{tpu_custom_call.1} parent=1 // loop_exit
      _
    %1686 = vsyncpa [#allocation3], 1
    %s1687 = scalar_lea.sflag [#allocation3], 1
    %1688 = vsyncpa %s1687, 1
    %1689 = vsyncpa [#allocation6], 1
    %1690 = vsyncpa [#allocation9], 1
    %1691 = vsyncpa [#allocation4], 1
    %s1692 = scalar_lea.sflag [#allocation4], 1
    %1693 = vsyncpa %s1692, 1

</llo_original>
